<compile_context>
chip_gen: v6e
topology: v6e:2x2x1
jax: 0.10.0
libtpu: 0.0.40
codegen_flags: <defaults>
</compile_context>

<pallas_src>
import functools
import math

import jax
import jax.numpy as jnp
from jax.experimental import pallas as pl
from jax.experimental.pallas import tpu as pltpu


VMEM_LIMIT_BYTES = 48 * 1024 * 1024   # safe on v5e/v6e (128 MiB) and v7x (64 MiB physical)
ROW_TILE_CAP = 256                    # MXU-height multiple; review-recommended tile


def _cp(n_parallel_axes):
    return pltpu.CompilerParams(
        dimension_semantics=("parallel",) * n_parallel_axes,
        vmem_limit_bytes=VMEM_LIMIT_BYTES,
    )


def _round_up(x, m):
    return ((x + m - 1) // m) * m


def _row_tile(M, cap=ROW_TILE_CAP):
    """Pick a row tile (multiple of 8, <= cap) and the padded row count."""
    tm = min(cap, _round_up(M, 8))
    Mp = _round_up(M, tm)
    return tm, Mp


def _pad_rows(x, Mp):
    M = x.shape[0]
    if Mp == M:
        return x
    return jnp.pad(x, ((0, Mp - M), (0, 0)))


# ----------------------------------------------------------------------------
# Pallas kernels
# ----------------------------------------------------------------------------

def _gelu(x):
    # tanh approximation (PyTorch default GELU is erf; difference is tiny)
    return 0.5 * x * (1.0 + jnp.tanh(0.7978845608028654 * (x + 0.044715 * x * x * x)))


def _linear_kernel(x_ref, w_ref, b_ref, o_ref, *, activation):
    x = x_ref[...]                                            # (tm, K)
    w = w_ref[...]                                            # (K, N)
    y = jnp.dot(x, w, preferred_element_type=jnp.float32) + b_ref[...]
    if activation == "gelu":
        y = _gelu(y)
    o_ref[...] = y.astype(o_ref.dtype)


def pallas_linear(x, w, b, activation=None):
    """y = act(x @ w + b); x:(M,K) w:(K,N) b:(N,). Weight kept VMEM-resident."""
    M, K = x.shape
    N = w.shape[1]
    tm, Mp = _row_tile(M)
    xp = _pad_rows(x, Mp)
    kern = functools.partial(_linear_kernel, activation=activation)
    out = pl.pallas_call(
        kern,
        out_shape=jax.ShapeDtypeStruct((Mp, N), x.dtype),
        grid=(Mp // tm,),
        in_specs=[
            pl.BlockSpec((tm, K), lambda i: (i, 0)),
            pl.BlockSpec((K, N), lambda i: (0, 0)),
            pl.BlockSpec((1, N), lambda i: (0, 0)),
        ],
        out_specs=pl.BlockSpec((tm, N), lambda i: (i, 0)),
        compiler_params=_cp(1),
    )(xp, w, b.reshape(1, N))
    return out if Mp == M else out[:M]


def _add_layernorm_kernel(x_ref, r_ref, g_ref, b_ref, o_ref, *, eps):
    # fused residual add + layernorm (stats in f32)
    x = x_ref[...].astype(jnp.float32) + r_ref[...].astype(jnp.float32)
    mu = jnp.mean(x, axis=-1, keepdims=True)
    var = jnp.mean((x - mu) * (x - mu), axis=-1, keepdims=True)
    xn = (x - mu) * jax.lax.rsqrt(var + eps)
    o_ref[...] = (xn * g_ref[...] + b_ref[...]).astype(o_ref.dtype)


def pallas_add_layernorm(x, residual, gamma, beta, eps=1e-5):
    M, H = x.shape
    tm, Mp = _row_tile(M)
    xp = _pad_rows(x, Mp)
    rp = _pad_rows(residual, Mp)
    kern = functools.partial(_add_layernorm_kernel, eps=eps)
    out = pl.pallas_call(
        kern,
        out_shape=jax.ShapeDtypeStruct((Mp, H), x.dtype),
        grid=(Mp // tm,),
        in_specs=[
            pl.BlockSpec((tm, H), lambda i: (i, 0)),
            pl.BlockSpec((tm, H), lambda i: (i, 0)),
            pl.BlockSpec((1, H), lambda i: (0, 0)),
            pl.BlockSpec((1, H), lambda i: (0, 0)),
        ],
        out_specs=pl.BlockSpec((tm, H), lambda i: (i, 0)),
        compiler_params=_cp(1),
    )(xp, rp, gamma.reshape(1, H), beta.reshape(1, H))
    return out if Mp == M else out[:M]


def _attention_kernel(qkv_ref, m_ref, o_ref, *, n_heads, scale):
    qkv = qkv_ref[0]                            # (L, 3H) packed q|k|v
    H = qkv.shape[1] // 3
    dh = H // n_heads
    mask_add = m_ref[0]                         # (1, L) additive key-pad mask

    outs = []
    for h in range(n_heads):                    # static loop over heads
        q = qkv[:, h * dh:(h + 1) * dh]
        k = qkv[:, H + h * dh:H + (h + 1) * dh]
        v = qkv[:, 2 * H + h * dh:2 * H + (h + 1) * dh]
        # contract the dh axes directly; no explicit transpose of k
        s = jax.lax.dot_general(q, k, (((1,), (1,)), ((), ())),
                                preferred_element_type=jnp.float32) * scale
        s = s + mask_add
        s = s - jnp.max(s, axis=-1, keepdims=True)
        p = jnp.exp(s)
        l = jnp.sum(p, axis=-1, keepdims=True)
        o = jnp.dot(p.astype(v.dtype), v, preferred_element_type=jnp.float32)
        outs.append(o * pl.reciprocal(l, approx=True))
    # one lane-dense (L, H) store instead of per-head dh-wide masked stores
    o_ref[0] = jnp.concatenate(outs, axis=-1).astype(o_ref.dtype)


def pallas_attention(qkv, mask_add, n_heads):
    """qkv: (B, L, 3H) packed projections; mask_add: (B, 1, L) additive bias."""
    B, L, threeH = qkv.shape
    H = threeH // 3
    dh = H // n_heads
    kern = functools.partial(_attention_kernel, n_heads=n_heads,
                             scale=1.0 / math.sqrt(dh))
    return pl.pallas_call(
        kern,
        out_shape=jax.ShapeDtypeStruct((B, L, H), qkv.dtype),
        grid=(B,),
        in_specs=[
            pl.BlockSpec((1, L, threeH), lambda b: (b, 0, 0)),
            pl.BlockSpec((1, 1, L), lambda b: (b, 0, 0)),
        ],
        out_specs=pl.BlockSpec((1, L, H), lambda b: (b, 0, 0)),
        compiler_params=_cp(1),
    )(qkv, mask_add)


def _mlm_head_kernel(x_ref, e_ref, b_ref, o_ref):
    x = x_ref[...]                              # (tm, H)
    e = e_ref[...]                              # (tn, H)  (vocab tile of token embed)
    # weight-tied head: x @ E.T, without materializing E.T
    y = jax.lax.dot_general(x, e, (((1,), (1,)), ((), ())),
                            preferred_element_type=jnp.float32)
    o_ref[...] = (y + b_ref[...]).astype(o_ref.dtype)


def pallas_mlm_head(x, token_embed, bias):
    """logits = x @ token_embed.T + bias, tiled over (rows, vocab)."""
    M, H = x.shape
    V = token_embed.shape[0]
    tm, Mp = _row_tile(M)
    Vp = _round_up(V, 128)
    tn = 256 if Vp % 256 == 0 else 128
    xp = _pad_rows(x, Mp)
    ep = token_embed if Vp == V else jnp.pad(token_embed, ((0, Vp - V), (0, 0)))
    bp = bias if Vp == V else jnp.pad(bias, (0, Vp - V))
    out = pl.pallas_call(
        _mlm_head_kernel,
        out_shape=jax.ShapeDtypeStruct((Mp, Vp), x.dtype),
        grid=(Mp // tm, Vp // tn),
        in_specs=[
            pl.BlockSpec((tm, H), lambda i, j: (i, 0)),
            pl.BlockSpec((tn, H), lambda i, j: (j, 0)),
            pl.BlockSpec((1, tn), lambda i, j: (0, j)),
        ],
        out_specs=pl.BlockSpec((tm, tn), lambda i, j: (i, j)),
        compiler_params=_cp(2),
    )(xp, ep, bp.reshape(1, Vp))
    return out[:M, :V]


# ----------------------------------------------------------------------------
# Parameter construction (deterministic, synthetic)
# ----------------------------------------------------------------------------

def init_params(key, vocab_size, n_layers, hidden_dim, mlp_dim, embed_dim, pad_idx):
    # TODO(synk): bf16 weight/activation casting for v6e/v7x left out; f32 kept
    # for cross-generation correctness (v5e VPU/EUP have no bf16 path).
    def nrm(k, shape, s=0.02):
        return (s * jax.random.normal(k, shape)).astype(jnp.float32)

    keys = jax.random.split(key, 4 + n_layers)
    p = {}
    tok = nrm(keys[0], (vocab_size, embed_dim))
    tok = tok.at[pad_idx].set(0.0)                       # padding_idx row is zero
    p["token_embed"] = tok
    seg = nrm(keys[1], (3, embed_dim))
    seg = seg.at[pad_idx].set(0.0)
    p["seg_embed"] = seg
    p["mlm_bias"] = jnp.zeros((vocab_size,), jnp.float32)

    layers = []
    for li in range(n_layers):
        lk = jax.random.split(keys[4 + li], 8)
        wq = nrm(lk[0], (hidden_dim, hidden_dim))
        wk = nrm(lk[1], (hidden_dim, hidden_dim))
        wv = nrm(lk[2], (hidden_dim, hidden_dim))
        layers.append(dict(
            # fused QKV projection: single (H, 3H) GEMM per layer
            wqkv=jnp.concatenate([wq, wk, wv], axis=1),
            bqkv=jnp.zeros((3 * hidden_dim,), jnp.float32),
            wo=nrm(lk[3], (hidden_dim, hidden_dim)), bo=jnp.zeros((hidden_dim,), jnp.float32),
            w1=nrm(lk[4], (hidden_dim, mlp_dim)),    b1=jnp.zeros((mlp_dim,), jnp.float32),
            w2=nrm(lk[5], (mlp_dim, hidden_dim)),    b2=jnp.zeros((hidden_dim,), jnp.float32),
            ln1_g=jnp.ones((hidden_dim,), jnp.float32), ln1_b=jnp.zeros((hidden_dim,), jnp.float32),
            ln2_g=jnp.ones((hidden_dim,), jnp.float32), ln2_b=jnp.zeros((hidden_dim,), jnp.float32),
        ))
    p["layers"] = layers
    return p


_POS_CACHE = {}


def sinusoid_pos_embed(L, D):
    key = (L, D)
    if key not in _POS_CACHE:
        pos = jnp.arange(L, dtype=jnp.float32)[:, None]
        i = jnp.arange(D)[None, :]
        angle = pos / jnp.power(10000.0, (2 * (i // 2)).astype(jnp.float32) / D)
        _POS_CACHE[key] = jnp.where(i % 2 == 0, jnp.sin(angle), jnp.cos(angle)).astype(jnp.float32)
    return _POS_CACHE[key]


# ----------------------------------------------------------------------------
# Generator forward
# ----------------------------------------------------------------------------

@functools.partial(jax.jit, static_argnames=("n_heads", "pad_idx"))
def generator_forward(params, seq, seg_ids, *, n_heads, pad_idx):
    B, L = seq.shape
    E = params["token_embed"]                  # (V, D)
    D = E.shape[1]
    H = D                                      # hidden_dim == embed_dim (tied head)

    # Embeddings (gathers are glue; fused in one XLA expression under jit)
    x = E[seq] + sinusoid_pos_embed(L, D)[None] + params["seg_embed"][seg_ids]
    # dropout: identity (eval mode)

    # pad mask -> additive attention bias over keys
    mask_add = jnp.where(seq == pad_idx, -1e9, 0.0).astype(jnp.float32).reshape(B, 1, L)

    xf = x.reshape(B * L, H)
    for lp in params["layers"]:
        # --- multi-head self attention (fused QKV, in-kernel head split) ---
        qkv = pallas_linear(xf, lp["wqkv"], lp["bqkv"])            # (B*L, 3H)
        attn = pallas_attention(qkv.reshape(B, L, 3 * H), mask_add, n_heads)  # (B, L, H)
        attn = pallas_linear(attn.reshape(B * L, H), lp["wo"], lp["bo"])
        xf = pallas_add_layernorm(xf, attn, lp["ln1_g"], lp["ln1_b"])   # post-LN, fused residual

        # --- feed-forward ---
        h = pallas_linear(xf, lp["w1"], lp["b1"], activation="gelu")
        h = pallas_linear(h, lp["w2"], lp["b2"])
        xf = pallas_add_layernorm(xf, h, lp["ln2_g"], lp["ln2_b"])

    # --- MLM head: weight tied to token embedding, vocab-tiled ---
    logits = pallas_mlm_head(xf, E, params["mlm_bias"])            # (B*L, V)
    return logits.reshape(B, L, -1)


# ----------------------------------------------------------------------------
# Main
# ----------------------------------------------------------------------------

if __name__ == "__main__":
    VOCAB, N_LAYERS, HIDDEN, MLP, EMBED, N_HEADS, PAD = 50, 2, 32, 64, 32, 4, 0
    B, L = 2, 8

    key = jax.random.PRNGKey(0)
    kp, ks = jax.random.split(key)
    params = init_params(kp, VOCAB, N_LAYERS, HIDDEN, MLP, EMBED, PAD)

    seq = jax.random.randint(ks, (B, L), 1, VOCAB, dtype=jnp.int32)
    seq = seq.at[:, -2:].set(PAD)                       # some pad positions
    seg_ids = jnp.where(seq == PAD, 0, 1).astype(jnp.int32)

    logits = generator_forward(params, seq, seg_ids, n_heads=N_HEADS, pad_idx=PAD)
    jax.block_until_ready(logits)
    assert logits.shape == (B, L, VOCAB)
    assert bool(jnp.all(jnp.isfinite(logits)))
    print("KERNEL_OK")
</pallas_src>

<mosaic_0001>
module attributes {stable_mosaic.version = 11 : i64} {
  func.func @_linear_kernel(%arg0: i32, %arg1: memref<16x32xf32, #tpu.memory_space<vmem>>, %arg2: memref<32x32xf32, #tpu.memory_space<vmem>>, %arg3: memref<1x32xf32, #tpu.memory_space<vmem>>, %arg4: memref<16x32xf32, #tpu.memory_space<vmem>>) attributes {dimension_semantics = [#tpu.dimension_semantics<parallel>], iteration_bounds = array<i64: 1>, scalar_prefetch = 0 : i64, scratch_operands = 0 : i64, tpu.core_type = #tpu.core_type<tc>, window_params = [{transform_indices = @transform_0, window_bounds = array<i64: 16, 32>}, {pipeline_mode = #tpu.pipeline_mode<synchronous>, transform_indices = @transform_1, window_bounds = array<i64: 32, 32>}, {pipeline_mode = #tpu.pipeline_mode<synchronous>, transform_indices = @transform_2, window_bounds = array<i64: 1, 32>}, {transform_indices = @transform_3, window_bounds = array<i64: 16, 32>}]} {
    %c0 = arith.constant 0 : index
    %c0_0 = arith.constant 0 : index
    %0 = vector.load %arg1[%c0, %c0_0] : memref<16x32xf32, #tpu.memory_space<vmem>>, vector<16x32xf32>
    %c0_1 = arith.constant 0 : index
    %c0_2 = arith.constant 0 : index
    %1 = vector.load %arg2[%c0_1, %c0_2] : memref<32x32xf32, #tpu.memory_space<vmem>>, vector<32x32xf32>
    %cst = arith.constant dense<0.000000e+00> : vector<16x32xf32>
    %2 = tpu.matmul %0, %1, %cst {dimension_numbers = #tpu.dot_dimension_numbers<[1], [0], [0], [1], [0, 0, 1, 1], [], []>} : vector<16x32xf32>, vector<32x32xf32>, vector<16x32xf32> -> vector<16x32xf32>
    %c0_3 = arith.constant 0 : index
    %c0_4 = arith.constant 0 : index
    %3 = vector.load %arg3[%c0_3, %c0_4] : memref<1x32xf32, #tpu.memory_space<vmem>>, vector<1x32xf32>
    %4 = vector.broadcast %3 : vector<1x32xf32> to vector<16x32xf32>
    %5 = arith.addf %2, %4 : vector<16x32xf32>
    %c0_5 = arith.constant 0 : index
    %c0_6 = arith.constant 0 : index
    %6 = vector.load %arg4[%c0_5, %c0_6] : memref<16x32xf32, #tpu.memory_space<vmem>>, vector<16x32xf32>
    tpu.vector_store %arg4[%c0_5, %c0_6], %5 {strides = array<i32>} : memref<16x32xf32, #tpu.memory_space<vmem>>, vector<16x32xf32>,
    return
  }
  func.func @transform_0(%arg0: i32) -> (i32, i32) {
    %c0_i32 = arith.constant 0 : i32
    %c0_i32_0 = arith.constant 0 : i32
    return %arg0, %c0_i32 : i32, i32
  }
  func.func @transform_1(%arg0: i32) -> (i32, i32) {
    %c0_i32 = arith.constant 0 : i32
    %c0_i32_0 = arith.constant 0 : i32
    %c0_i32_1 = arith.constant 0 : i32
    return %c0_i32, %c0_i32_0 : i32, i32
  }
  func.func @transform_2(%arg0: i32) -> (i32, i32) {
    %c0_i32 = arith.constant 0 : i32
    %c0_i32_0 = arith.constant 0 : i32
    %c0_i32_1 = arith.constant 0 : i32
    return %c0_i32, %c0_i32_0 : i32, i32
  }
  func.func @transform_3(%arg0: i32) -> (i32, i32) {
    %c0_i32 = arith.constant 0 : i32
    %c0_i32_0 = arith.constant 0 : i32
    return %arg0, %c0_i32 : i32, i32
  }
}

module attributes {stable_mosaic.version = 11 : i64} {
  func.func @_add_layernorm_kernel(%arg0: i32, %arg1: memref<16x32xf32, #tpu.memory_space<vmem>>, %arg2: memref<16x32xf32, #tpu.memory_space<vmem>>, %arg3: memref<1x32xf32, #tpu.memory_space<vmem>>, %arg4: memref<1x32xf32, #tpu.memory_space<vmem>>, %arg5: memref<16x32xf32, #tpu.memory_space<vmem>>) attributes {dimension_semantics = [#tpu.dimension_semantics<parallel>], iteration_bounds = array<i64: 1>, scalar_prefetch = 0 : i64, scratch_operands = 0 : i64, tpu.core_type = #tpu.core_type<tc>, window_params = [{transform_indices = @transform_0, window_bounds = array<i64: 16, 32>}, {transform_indices = @transform_1, window_bounds = array<i64: 16, 32>}, {pipeline_mode = #tpu.pipeline_mode<synchronous>, transform_indices = @transform_2, window_bounds = array<i64: 1, 32>}, {pipeline_mode = #tpu.pipeline_mode<synchronous>, transform_indices = @transform_3, window_bounds = array<i64: 1, 32>}, {transform_indices = @transform_4, window_bounds = array<i64: 16, 32>}]} {
    %c0 = arith.constant 0 : index
    %c0_0 = arith.constant 0 : index
    %0 = vector.load %arg1[%c0, %c0_0] : memref<16x32xf32, #tpu.memory_space<vmem>>, vector<16x32xf32>
    %c0_1 = arith.constant 0 : index
    %c0_2 = arith.constant 0 : index
    %1 = vector.load %arg2[%c0_1, %c0_2] : memref<16x32xf32, #tpu.memory_space<vmem>>, vector<16x32xf32>
    %2 = arith.addf %0, %1 : vector<16x32xf32>
    %cst = arith.constant dense<0.000000e+00> : vector<16xf32>
    %3 = vector.multi_reduction <add>, %2, %cst [1] : vector<16x32xf32> to vector<16xf32>
    %4 = vector.shape_cast %3 : vector<16xf32> to vector<16x1xf32>
    %cst_3 = arith.constant 3.200000e+01 : f32
    %5 = vector.broadcast %cst_3 : f32 to vector<16x1xf32>
    %6 = arith.divf %4, %5 : vector<16x1xf32>
    %7 = vector.broadcast %6 : vector<16x1xf32> to vector<16x32xf32>
    %8 = arith.subf %2, %7 : vector<16x32xf32>
    %9 = vector.broadcast %6 : vector<16x1xf32> to vector<16x32xf32>
    %10 = arith.subf %2, %9 : vector<16x32xf32>
    %11 = arith.mulf %8, %10 : vector<16x32xf32>
    %cst_4 = arith.constant dense<0.000000e+00> : vector<16xf32>
    %12 = vector.multi_reduction <add>, %11, %cst_4 [1] : vector<16x32xf32> to vector<16xf32>
    %13 = vector.shape_cast %12 : vector<16xf32> to vector<16x1xf32>
    %cst_5 = arith.constant 3.200000e+01 : f32
    %14 = vector.broadcast %cst_5 : f32 to vector<16x1xf32>
    %15 = arith.divf %13, %14 : vector<16x1xf32>
    %16 = vector.broadcast %6 : vector<16x1xf32> to vector<16x32xf32>
    %17 = arith.subf %2, %16 : vector<16x32xf32>
    %cst_6 = arith.constant 9.99999974E-6 : f32
    %18 = vector.broadcast %cst_6 : f32 to vector<16x1xf32>
    %19 = arith.addf %15, %18 : vector<16x1xf32>
    %20 = math.rsqrt %19 : vector<16x1xf32>
    %21 = vector.broadcast %20 : vector<16x1xf32> to vector<16x32xf32>
    %22 = arith.mulf %17, %21 : vector<16x32xf32>
    %c0_7 = arith.constant 0 : index
    %c0_8 = arith.constant 0 : index
    %23 = vector.load %arg3[%c0_7, %c0_8] : memref<1x32xf32, #tpu.memory_space<vmem>>, vector<1x32xf32>
    %24 = vector.broadcast %23 : vector<1x32xf32> to vector<16x32xf32>
    %25 = arith.mulf %22, %24 : vector<16x32xf32>
    %c0_9 = arith.constant 0 : index
    %c0_10 = arith.constant 0 : index
    %26 = vector.load %arg4[%c0_9, %c0_10] : memref<1x32xf32, #tpu.memory_space<vmem>>, vector<1x32xf32>
    %27 = vector.broadcast %26 : vector<1x32xf32> to vector<16x32xf32>
    %28 = arith.addf %25, %27 : vector<16x32xf32>
    %c0_11 = arith.constant 0 : index
    %c0_12 = arith.constant 0 : index
    %29 = vector.load %arg5[%c0_11, %c0_12] : memref<16x32xf32, #tpu.memory_space<vmem>>, vector<16x32xf32>
    tpu.vector_store %arg5[%c0_11, %c0_12], %28 {strides = array<i32>} : memref<16x32xf32, #tpu.memory_space<vmem>>, vector<16x32xf32>,
    return
  }
  func.func @transform_0(%arg0: i32) -> (i32, i32) {
    %c0_i32 = arith.constant 0 : i32
    %c0_i32_0 = arith.constant 0 : i32
    return %arg0, %c0_i32 : i32, i32
  }
  func.func @transform_1(%arg0: i32) -> (i32, i32) {
    %c0_i32 = arith.constant 0 : i32
    %c0_i32_0 = arith.constant 0 : i32
    return %arg0, %c0_i32 : i32, i32
  }
  func.func @transform_2(%arg0: i32) -> (i32, i32) {
    %c0_i32 = arith.constant 0 : i32
    %c0_i32_0 = arith.constant 0 : i32
    %c0_i32_1 = arith.constant 0 : i32
    return %c0_i32, %c0_i32_0 : i32, i32
  }
  func.func @transform_3(%arg0: i32) -> (i32, i32) {
    %c0_i32 = arith.constant 0 : i32
    %c0_i32_0 = arith.constant 0 : i32
    %c0_i32_1 = arith.constant 0 : i32
    return %c0_i32, %c0_i32_0 : i32, i32
  }
  func.func @transform_4(%arg0: i32) -> (i32, i32) {
    %c0_i32 = arith.constant 0 : i32
    %c0_i32_0 = arith.constant 0 : i32
    return %arg0, %c0_i32 : i32, i32
  }
}

module attributes {stable_mosaic.version = 11 : i64} {
  func.func @_attention_kernel(%arg0: i32, %arg1: memref<1x8x96xf32, #tpu.memory_space<vmem>>, %arg2: memref<1x1x8xf32, #tpu.memory_space<vmem>>, %arg3: memref<1x8x32xf32, #tpu.memory_space<vmem>>) attributes {dimension_semantics = [#tpu.dimension_semantics<parallel>], iteration_bounds = array<i64: 2>, scalar_prefetch = 0 : i64, scratch_operands = 0 : i64, tpu.core_type = #tpu.core_type<tc>, window_params = [{transform_indices = @transform_0, window_bounds = array<i64: 1, 8, 96>}, {transform_indices = @transform_1, window_bounds = array<i64: 1, 1, 8>}, {transform_indices = @transform_2, window_bounds = array<i64: 1, 8, 32>}]} {
    %c0 = arith.constant 0 : index
    %c0_0 = arith.constant 0 : index
    %c0_1 = arith.constant 0 : index
    %0 = vector.load %arg1[%c0, %c0_0, %c0_1] : memref<1x8x96xf32, #tpu.memory_space<vmem>>, vector<1x8x96xf32>
    %1 = vector.shape_cast %0 : vector<1x8x96xf32> to vector<8x96xf32>
    %c0_2 = arith.constant 0 : index
    %c0_3 = arith.constant 0 : index
    %c0_4 = arith.constant 0 : index
    %2 = vector.load %arg2[%c0_2, %c0_3, %c0_4] : memref<1x1x8xf32, #tpu.memory_space<vmem>>, vector<1x1x8xf32>
    %3 = vector.shape_cast %2 : vector<1x1x8xf32> to vector<1x8xf32>
    %4 = vector.extract_strided_slice %1 {offsets = [0, 0], sizes = [8, 8], strides = [1, 1]} : vector<8x96xf32> to vector<8x8xf32>
    %5 = vector.extract_strided_slice %1 {offsets = [0, 32], sizes = [8, 8], strides = [1, 1]} : vector<8x96xf32> to vector<8x8xf32>
    %6 = vector.extract_strided_slice %1 {offsets = [0, 64], sizes = [8, 8], strides = [1, 1]} : vector<8x96xf32> to vector<8x8xf32>
    %cst = arith.constant dense<0.000000e+00> : vector<8x8xf32>
    %7 = tpu.matmul %4, %5, %cst {dimension_numbers = #tpu.dot_dimension_numbers<[1], [1], [0], [0], [0, 0, 1, 0], [], []>} : vector<8x8xf32>, vector<8x8xf32>, vector<8x8xf32> -> vector<8x8xf32>
    %cst_5 = arith.constant 0.353553385 : f32
    %8 = vector.broadcast %cst_5 : f32 to vector<8x8xf32>
    %9 = arith.mulf %7, %8 : vector<8x8xf32>
    %10 = vector.broadcast %3 : vector<1x8xf32> to vector<8x8xf32>
    %11 = arith.addf %9, %10 : vector<8x8xf32>
    %cst_6 = arith.constant dense<0xFF800000> : vector<8xf32>
    %12 = vector.multi_reduction <maximumf>, %11, %cst_6 [1] : vector<8x8xf32> to vector<8xf32>
    %13 = vector.shape_cast %12 : vector<8xf32> to vector<8x1xf32>
    %14 = vector.broadcast %13 : vector<8x1xf32> to vector<8x8xf32>
    %15 = arith.subf %11, %14 : vector<8x8xf32>
    %16 = math.exp %15 : vector<8x8xf32>
    %cst_7 = arith.constant dense<0.000000e+00> : vector<8xf32>
    %17 = vector.multi_reduction <add>, %16, %cst_7 [1] : vector<8x8xf32> to vector<8xf32>
    %18 = vector.shape_cast %17 : vector<8xf32> to vector<8x1xf32>
    %cst_8 = arith.constant dense<0.000000e+00> : vector<8x8xf32>
    %19 = tpu.matmul %16, %6, %cst_8 {dimension_numbers = #tpu.dot_dimension_numbers<[1], [0], [0], [1], [0, 0, 1, 1], [], []>} : vector<8x8xf32>, vector<8x8xf32>, vector<8x8xf32> -> vector<8x8xf32>
    %20 = tpu.reciprocal %18 {approx = true} : vector<8x1xf32> -> vector<8x1xf32>
    %21 = vector.broadcast %20 : vector<8x1xf32> to vector<8x8xf32>
    %22 = arith.mulf %19, %21 : vector<8x8xf32>
    %23 = vector.extract_strided_slice %1 {offsets = [0, 8], sizes = [8, 8], strides = [1, 1]} : vector<8x96xf32> to vector<8x8xf32>
    %24 = vector.extract_strided_slice %1 {offsets = [0, 40], sizes = [8, 8], strides = [1, 1]} : vector<8x96xf32> to vector<8x8xf32>
    %25 = vector.extract_strided_slice %1 {offsets = [0, 72], sizes = [8, 8], strides = [1, 1]} : vector<8x96xf32> to vector<8x8xf32>
    %cst_9 = arith.constant dense<0.000000e+00> : vector<8x8xf32>
    %26 = tpu.matmul %23, %24, %cst_9 {dimension_numbers = #tpu.dot_dimension_numbers<[1], [1], [0], [0], [0, 0, 1, 0], [], []>} : vector<8x8xf32>, vector<8x8xf32>, vector<8x8xf32> -> vector<8x8xf32>
    %cst_10 = arith.constant 0.353553385 : f32
    %27 = vector.broadcast %cst_10 : f32 to vector<8x8xf32>
    %28 = arith.mulf %26, %27 : vector<8x8xf32>
    %29 = vector.broadcast %3 : vector<1x8xf32> to vector<8x8xf32>
    %30 = arith.addf %28, %29 : vector<8x8xf32>
    %cst_11 = arith.constant dense<0xFF800000> : vector<8xf32>
    %31 = vector.multi_reduction <maximumf>, %30, %cst_11 [1] : vector<8x8xf32> to vector<8xf32>
    %32 = vector.shape_cast %31 : vector<8xf32> to vector<8x1xf32>
    %33 = vector.broadcast %32 : vector<8x1xf32> to vector<8x8xf32>
    %34 = arith.subf %30, %33 : vector<8x8xf32>
    %35 = math.exp %34 : vector<8x8xf32>
    %cst_12 = arith.constant dense<0.000000e+00> : vector<8xf32>
    %36 = vector.multi_reduction <add>, %35, %cst_12 [1] : vector<8x8xf32> to vector<8xf32>
    %37 = vector.shape_cast %36 : vector<8xf32> to vector<8x1xf32>
    %cst_13 = arith.constant dense<0.000000e+00> : vector<8x8xf32>
    %38 = tpu.matmul %35, %25, %cst_13 {dimension_numbers = #tpu.dot_dimension_numbers<[1], [0], [0], [1], [0, 0, 1, 1], [], []>} : vector<8x8xf32>, vector<8x8xf32>, vector<8x8xf32> -> vector<8x8xf32>
    %39 = tpu.reciprocal %37 {approx = true} : vector<8x1xf32> -> vector<8x1xf32>
    %40 = vector.broadcast %39 : vector<8x1xf32> to vector<8x8xf32>
    %41 = arith.mulf %38, %40 : vector<8x8xf32>
    %42 = vector.extract_strided_slice %1 {offsets = [0, 16], sizes = [8, 8], strides = [1, 1]} : vector<8x96xf32> to vector<8x8xf32>
    %43 = vector.extract_strided_slice %1 {offsets = [0, 48], sizes = [8, 8], strides = [1, 1]} : vector<8x96xf32> to vector<8x8xf32>
    %44 = vector.extract_strided_slice %1 {offsets = [0, 80], sizes = [8, 8], strides = [1, 1]} : vector<8x96xf32> to vector<8x8xf32>
    %cst_14 = arith.constant dense<0.000000e+00> : vector<8x8xf32>
    %45 = tpu.matmul %42, %43, %cst_14 {dimension_numbers = #tpu.dot_dimension_numbers<[1], [1], [0], [0], [0, 0, 1, 0], [], []>} : vector<8x8xf32>, vector<8x8xf32>, vector<8x8xf32> -> vector<8x8xf32>
    %cst_15 = arith.constant 0.353553385 : f32
    %46 = vector.broadcast %cst_15 : f32 to vector<8x8xf32>
    %47 = arith.mulf %45, %46 : vector<8x8xf32>
    %48 = vector.broadcast %3 : vector<1x8xf32> to vector<8x8xf32>
    %49 = arith.addf %47, %48 : vector<8x8xf32>
    %cst_16 = arith.constant dense<0xFF800000> : vector<8xf32>
    %50 = vector.multi_reduction <maximumf>, %49, %cst_16 [1] : vector<8x8xf32> to vector<8xf32>
    %51 = vector.shape_cast %50 : vector<8xf32> to vector<8x1xf32>
    %52 = vector.broadcast %51 : vector<8x1xf32> to vector<8x8xf32>
    %53 = arith.subf %49, %52 : vector<8x8xf32>
    %54 = math.exp %53 : vector<8x8xf32>
    %cst_17 = arith.constant dense<0.000000e+00> : vector<8xf32>
    %55 = vector.multi_reduction <add>, %54, %cst_17 [1] : vector<8x8xf32> to vector<8xf32>
    %56 = vector.shape_cast %55 : vector<8xf32> to vector<8x1xf32>
    %cst_18 = arith.constant dense<0.000000e+00> : vector<8x8xf32>
    %57 = tpu.matmul %54, %44, %cst_18 {dimension_numbers = #tpu.dot_dimension_numbers<[1], [0], [0], [1], [0, 0, 1, 1], [], []>} : vector<8x8xf32>, vector<8x8xf32>, vector<8x8xf32> -> vector<8x8xf32>
    %58 = tpu.reciprocal %56 {approx = true} : vector<8x1xf32> -> vector<8x1xf32>
    %59 = vector.broadcast %58 : vector<8x1xf32> to vector<8x8xf32>
    %60 = arith.mulf %57, %59 : vector<8x8xf32>
    %61 = vector.extract_strided_slice %1 {offsets = [0, 24], sizes = [8, 8], strides = [1, 1]} : vector<8x96xf32> to vector<8x8xf32>
    %62 = vector.extract_strided_slice %1 {offsets = [0, 56], sizes = [8, 8], strides = [1, 1]} : vector<8x96xf32> to vector<8x8xf32>
    %63 = vector.extract_strided_slice %1 {offsets = [0, 88], sizes = [8, 8], strides = [1, 1]} : vector<8x96xf32> to vector<8x8xf32>
    %cst_19 = arith.constant dense<0.000000e+00> : vector<8x8xf32>
    %64 = tpu.matmul %61, %62, %cst_19 {dimension_numbers = #tpu.dot_dimension_numbers<[1], [1], [0], [0], [0, 0, 1, 0], [], []>} : vector<8x8xf32>, vector<8x8xf32>, vector<8x8xf32> -> vector<8x8xf32>
    %cst_20 = arith.constant 0.353553385 : f32
    %65 = vector.broadcast %cst_20 : f32 to vector<8x8xf32>
    %66 = arith.mulf %64, %65 : vector<8x8xf32>
    %67 = vector.broadcast %3 : vector<1x8xf32> to vector<8x8xf32>
    %68 = arith.addf %66, %67 : vector<8x8xf32>
    %cst_21 = arith.constant dense<0xFF800000> : vector<8xf32>
    %69 = vector.multi_reduction <maximumf>, %68, %cst_21 [1] : vector<8x8xf32> to vector<8xf32>
    %70 = vector.shape_cast %69 : vector<8xf32> to vector<8x1xf32>
    %71 = vector.broadcast %70 : vector<8x1xf32> to vector<8x8xf32>
    %72 = arith.subf %68, %71 : vector<8x8xf32>
    %73 = math.exp %72 : vector<8x8xf32>
    %cst_22 = arith.constant dense<0.000000e+00> : vector<8xf32>
    %74 = vector.multi_reduction <add>, %73, %cst_22 [1] : vector<8x8xf32> to vector<8xf32>
    %75 = vector.shape_cast %74 : vector<8xf32> to vector<8x1xf32>
    %cst_23 = arith.constant dense<0.000000e+00> : vector<8x8xf32>
    %76 = tpu.matmul %73, %63, %cst_23 {dimension_numbers = #tpu.dot_dimension_numbers<[1], [0], [0], [1], [0, 0, 1, 1], [], []>} : vector<8x8xf32>, vector<8x8xf32>, vector<8x8xf32> -> vector<8x8xf32>
    %77 = tpu.reciprocal %75 {approx = true} : vector<8x1xf32> -> vector<8x1xf32>
    %78 = vector.broadcast %77 : vector<8x1xf32> to vector<8x8xf32>
    %79 = arith.mulf %76, %78 : vector<8x8xf32>
    %80 = tpu.concatenate %22, %41, %60, %79 in 1 : vector<8x8xf32>, vector<8x8xf32>, vector<8x8xf32>, vector<8x8xf32> -> vector<8x32xf32>
    %c0_24 = arith.constant 0 : index
    %c0_25 = arith.constant 0 : index
    %c0_26 = arith.constant 0 : index
    %81 = vector.load %arg3[%c0_24, %c0_25, %c0_26] : memref<1x8x32xf32, #tpu.memory_space<vmem>>, vector<1x8x32xf32>
    %82 = vector.shape_cast %81 : vector<1x8x32xf32> to vector<8x32xf32>
    %83 = vector.shape_cast %80 : vector<8x32xf32> to vector<1x8x32xf32>
    tpu.vector_store %arg3[%c0_24, %c0_25, %c0_26], %83 {strides = array<i32>} : memref<1x8x32xf32, #tpu.memory_space<vmem>>, vector<1x8x32xf32>,
    return
  }
  func.func @transform_0(%arg0: i32) -> (i32, i32, i32) {
    %c0_i32 = arith.constant 0 : i32
    %c0_i32_0 = arith.constant 0 : i32
    %c0_i32_1 = arith.constant 0 : i32
    return %arg0, %c0_i32, %c0_i32_0 : i32, i32, i32
  }
  func.func @transform_1(%arg0: i32) -> (i32, i32, i32) {
    %c0_i32 = arith.constant 0 : i32
    %c0_i32_0 = arith.constant 0 : i32
    %c0_i32_1 = arith.constant 0 : i32
    return %arg0, %c0_i32, %c0_i32_0 : i32, i32, i32
  }
  func.func @transform_2(%arg0: i32) -> (i32, i32, i32) {
    %c0_i32 = arith.constant 0 : i32
    %c0_i32_0 = arith.constant 0 : i32
    %c0_i32_1 = arith.constant 0 : i32
    return %arg0, %c0_i32, %c0_i32_0 : i32, i32, i32
  }
}

module attributes {stable_mosaic.version = 11 : i64} {
  func.func @_linear_kernel(%arg0: i32, %arg1: memref<16x32xf32, #tpu.memory_space<vmem>>, %arg2: memref<32x96xf32, #tpu.memory_space<vmem>>, %arg3: memref<1x96xf32, #tpu.memory_space<vmem>>, %arg4: memref<16x96xf32, #tpu.memory_space<vmem>>) attributes {dimension_semantics = [#tpu.dimension_semantics<parallel>], iteration_bounds = array<i64: 1>, scalar_prefetch = 0 : i64, scratch_operands = 0 : i64, tpu.core_type = #tpu.core_type<tc>, window_params = [{transform_indices = @transform_0, window_bounds = array<i64: 16, 32>}, {pipeline_mode = #tpu.pipeline_mode<synchronous>, transform_indices = @transform_1, window_bounds = array<i64: 32, 96>}, {pipeline_mode = #tpu.pipeline_mode<synchronous>, transform_indices = @transform_2, window_bounds = array<i64: 1, 96>}, {transform_indices = @transform_3, window_bounds = array<i64: 16, 96>}]} {
    %c0 = arith.constant 0 : index
    %c0_0 = arith.constant 0 : index
    %0 = vector.load %arg1[%c0, %c0_0] : memref<16x32xf32, #tpu.memory_space<vmem>>, vector<16x32xf32>
    %c0_1 = arith.constant 0 : index
    %c0_2 = arith.constant 0 : index
    %1 = vector.load %arg2[%c0_1, %c0_2] : memref<32x96xf32, #tpu.memory_space<vmem>>, vector<32x96xf32>
    %cst = arith.constant dense<0.000000e+00> : vector<16x96xf32>
    %2 = tpu.matmul %0, %1, %cst {dimension_numbers = #tpu.dot_dimension_numbers<[1], [0], [0], [1], [0, 0, 1, 1], [], []>} : vector<16x32xf32>, vector<32x96xf32>, vector<16x96xf32> -> vector<16x96xf32>
    %c0_3 = arith.constant 0 : index
    %c0_4 = arith.constant 0 : index
    %3 = vector.load %arg3[%c0_3, %c0_4] : memref<1x96xf32, #tpu.memory_space<vmem>>, vector<1x96xf32>
    %4 = vector.broadcast %3 : vector<1x96xf32> to vector<16x96xf32>
    %5 = arith.addf %2, %4 : vector<16x96xf32>
    %c0_5 = arith.constant 0 : index
    %c0_6 = arith.constant 0 : index
    %6 = vector.load %arg4[%c0_5, %c0_6] : memref<16x96xf32, #tpu.memory_space<vmem>>, vector<16x96xf32>
    tpu.vector_store %arg4[%c0_5, %c0_6], %5 {strides = array<i32>} : memref<16x96xf32, #tpu.memory_space<vmem>>, vector<16x96xf32>,
    return
  }
  func.func @transform_0(%arg0: i32) -> (i32, i32) {
    %c0_i32 = arith.constant 0 : i32
    %c0_i32_0 = arith.constant 0 : i32
    return %arg0, %c0_i32 : i32, i32
  }
  func.func @transform_1(%arg0: i32) -> (i32, i32) {
    %c0_i32 = arith.constant 0 : i32
    %c0_i32_0 = arith.constant 0 : i32
    %c0_i32_1 = arith.constant 0 : i32
    return %c0_i32, %c0_i32_0 : i32, i32
  }
  func.func @transform_2(%arg0: i32) -> (i32, i32) {
    %c0_i32 = arith.constant 0 : i32
    %c0_i32_0 = arith.constant 0 : i32
    %c0_i32_1 = arith.constant 0 : i32
    return %c0_i32, %c0_i32_0 : i32, i32
  }
  func.func @transform_3(%arg0: i32) -> (i32, i32) {
    %c0_i32 = arith.constant 0 : i32
    %c0_i32_0 = arith.constant 0 : i32
    return %arg0, %c0_i32 : i32, i32
  }
}

module attributes {stable_mosaic.version = 11 : i64} {
  func.func @_linear_kernel(%arg0: i32, %arg1: memref<16x64xf32, #tpu.memory_space<vmem>>, %arg2: memref<64x32xf32, #tpu.memory_space<vmem>>, %arg3: memref<1x32xf32, #tpu.memory_space<vmem>>, %arg4: memref<16x32xf32, #tpu.memory_space<vmem>>) attributes {dimension_semantics = [#tpu.dimension_semantics<parallel>], iteration_bounds = array<i64: 1>, scalar_prefetch = 0 : i64, scratch_operands = 0 : i64, tpu.core_type = #tpu.core_type<tc>, window_params = [{transform_indices = @transform_0, window_bounds = array<i64: 16, 64>}, {pipeline_mode = #tpu.pipeline_mode<synchronous>, transform_indices = @transform_1, window_bounds = array<i64: 64, 32>}, {pipeline_mode = #tpu.pipeline_mode<synchronous>, transform_indices = @transform_2, window_bounds = array<i64: 1, 32>}, {transform_indices = @transform_3, window_bounds = array<i64: 16, 32>}]} {
    %c0 = arith.constant 0 : index
    %c0_0 = arith.constant 0 : index
    %0 = vector.load %arg1[%c0, %c0_0] : memref<16x64xf32, #tpu.memory_space<vmem>>, vector<16x64xf32>
    %c0_1 = arith.constant 0 : index
    %c0_2 = arith.constant 0 : index
    %1 = vector.load %arg2[%c0_1, %c0_2] : memref<64x32xf32, #tpu.memory_space<vmem>>, vector<64x32xf32>
    %cst = arith.constant dense<0.000000e+00> : vector<16x32xf32>
    %2 = tpu.matmul %0, %1, %cst {dimension_numbers = #tpu.dot_dimension_numbers<[1], [0], [0], [1], [0, 0, 1, 1], [], []>} : vector<16x64xf32>, vector<64x32xf32>, vector<16x32xf32> -> vector<16x32xf32>
    %c0_3 = arith.constant 0 : index
    %c0_4 = arith.constant 0 : index
    %3 = vector.load %arg3[%c0_3, %c0_4] : memref<1x32xf32, #tpu.memory_space<vmem>>, vector<1x32xf32>
    %4 = vector.broadcast %3 : vector<1x32xf32> to vector<16x32xf32>
    %5 = arith.addf %2, %4 : vector<16x32xf32>
    %c0_5 = arith.constant 0 : index
    %c0_6 = arith.constant 0 : index
    %6 = vector.load %arg4[%c0_5, %c0_6] : memref<16x32xf32, #tpu.memory_space<vmem>>, vector<16x32xf32>
    tpu.vector_store %arg4[%c0_5, %c0_6], %5 {strides = array<i32>} : memref<16x32xf32, #tpu.memory_space<vmem>>, vector<16x32xf32>,
    return
  }
  func.func @transform_0(%arg0: i32) -> (i32, i32) {
    %c0_i32 = arith.constant 0 : i32
    %c0_i32_0 = arith.constant 0 : i32
    return %arg0, %c0_i32 : i32, i32
  }
  func.func @transform_1(%arg0: i32) -> (i32, i32) {
    %c0_i32 = arith.constant 0 : i32
    %c0_i32_0 = arith.constant 0 : i32
    %c0_i32_1 = arith.constant 0 : i32
    return %c0_i32, %c0_i32_0 : i32, i32
  }
  func.func @transform_2(%arg0: i32) -> (i32, i32) {
    %c0_i32 = arith.constant 0 : i32
    %c0_i32_0 = arith.constant 0 : i32
    %c0_i32_1 = arith.constant 0 : i32
    return %c0_i32, %c0_i32_0 : i32, i32
  }
  func.func @transform_3(%arg0: i32) -> (i32, i32) {
    %c0_i32 = arith.constant 0 : i32
    %c0_i32_0 = arith.constant 0 : i32
    return %arg0, %c0_i32 : i32, i32
  }
}

module attributes {stable_mosaic.version = 11 : i64} {
  func.func @_linear_kernel(%arg0: i32, %arg1: memref<16x32xf32, #tpu.memory_space<vmem>>, %arg2: memref<32x64xf32, #tpu.memory_space<vmem>>, %arg3: memref<1x64xf32, #tpu.memory_space<vmem>>, %arg4: memref<16x64xf32, #tpu.memory_space<vmem>>) attributes {dimension_semantics = [#tpu.dimension_semantics<parallel>], iteration_bounds = array<i64: 1>, scalar_prefetch = 0 : i64, scratch_operands = 0 : i64, tpu.core_type = #tpu.core_type<tc>, window_params = [{transform_indices = @transform_0, window_bounds = array<i64: 16, 32>}, {pipeline_mode = #tpu.pipeline_mode<synchronous>, transform_indices = @transform_1, window_bounds = array<i64: 32, 64>}, {pipeline_mode = #tpu.pipeline_mode<synchronous>, transform_indices = @transform_2, window_bounds = array<i64: 1, 64>}, {transform_indices = @transform_3, window_bounds = array<i64: 16, 64>}]} {
    %c0 = arith.constant 0 : index
    %c0_0 = arith.constant 0 : index
    %0 = vector.load %arg1[%c0, %c0_0] : memref<16x32xf32, #tpu.memory_space<vmem>>, vector<16x32xf32>
    %c0_1 = arith.constant 0 : index
    %c0_2 = arith.constant 0 : index
    %1 = vector.load %arg2[%c0_1, %c0_2] : memref<32x64xf32, #tpu.memory_space<vmem>>, vector<32x64xf32>
    %cst = arith.constant dense<0.000000e+00> : vector<16x64xf32>
    %2 = tpu.matmul %0, %1, %cst {dimension_numbers = #tpu.dot_dimension_numbers<[1], [0], [0], [1], [0, 0, 1, 1], [], []>} : vector<16x32xf32>, vector<32x64xf32>, vector<16x64xf32> -> vector<16x64xf32>
    %c0_3 = arith.constant 0 : index
    %c0_4 = arith.constant 0 : index
    %3 = vector.load %arg3[%c0_3, %c0_4] : memref<1x64xf32, #tpu.memory_space<vmem>>, vector<1x64xf32>
    %4 = vector.broadcast %3 : vector<1x64xf32> to vector<16x64xf32>
    %5 = arith.addf %2, %4 : vector<16x64xf32>
    %cst_5 = arith.constant 5.000000e-01 : f32
    %6 = vector.broadcast %cst_5 : f32 to vector<16x64xf32>
    %7 = arith.mulf %6, %5 : vector<16x64xf32>
    %cst_6 = arith.constant 4.471500e-02 : f32
    %8 = vector.broadcast %cst_6 : f32 to vector<16x64xf32>
    %9 = arith.mulf %8, %5 : vector<16x64xf32>
    %10 = arith.mulf %9, %5 : vector<16x64xf32>
    %11 = arith.mulf %10, %5 : vector<16x64xf32>
    %12 = arith.addf %5, %11 : vector<16x64xf32>
    %cst_7 = arith.constant 0.797884583 : f32
    %13 = vector.broadcast %cst_7 : f32 to vector<16x64xf32>
    %14 = arith.mulf %13, %12 : vector<16x64xf32>
    %15 = math.tanh %14 : vector<16x64xf32>
    %cst_8 = arith.constant 1.000000e+00 : f32
    %16 = vector.broadcast %cst_8 : f32 to vector<16x64xf32>
    %17 = arith.addf %16, %15 : vector<16x64xf32>
    %18 = arith.mulf %7, %17 : vector<16x64xf32>
    %c0_9 = arith.constant 0 : index
    %c0_10 = arith.constant 0 : index
    %19 = vector.load %arg4[%c0_9, %c0_10] : memref<16x64xf32, #tpu.memory_space<vmem>>, vector<16x64xf32>
    tpu.vector_store %arg4[%c0_9, %c0_10], %18 {strides = array<i32>} : memref<16x64xf32, #tpu.memory_space<vmem>>, vector<16x64xf32>,
    return
  }
  func.func @transform_0(%arg0: i32) -> (i32, i32) {
    %c0_i32 = arith.constant 0 : i32
    %c0_i32_0 = arith.constant 0 : i32
    return %arg0, %c0_i32 : i32, i32
  }
  func.func @transform_1(%arg0: i32) -> (i32, i32) {
    %c0_i32 = arith.constant 0 : i32
    %c0_i32_0 = arith.constant 0 : i32
    %c0_i32_1 = arith.constant 0 : i32
    return %c0_i32, %c0_i32_0 : i32, i32
  }
  func.func @transform_2(%arg0: i32) -> (i32, i32) {
    %c0_i32 = arith.constant 0 : i32
    %c0_i32_0 = arith.constant 0 : i32
    %c0_i32_1 = arith.constant 0 : i32
    return %c0_i32, %c0_i32_0 : i32, i32
  }
  func.func @transform_3(%arg0: i32) -> (i32, i32) {
    %c0_i32 = arith.constant 0 : i32
    %c0_i32_0 = arith.constant 0 : i32
    return %arg0, %c0_i32 : i32, i32
  }
}

module attributes {stable_mosaic.version = 11 : i64} {
  func.func @_mlm_head_kernel(%arg0: i32, %arg1: i32, %arg2: memref<16x32xf32, #tpu.memory_space<vmem>>, %arg3: memref<128x32xf32, #tpu.memory_space<vmem>>, %arg4: memref<1x128xf32, #tpu.memory_space<vmem>>, %arg5: memref<16x128xf32, #tpu.memory_space<vmem>>) attributes {dimension_semantics = [#tpu.dimension_semantics<parallel>, #tpu.dimension_semantics<parallel>], iteration_bounds = array<i64: 1, 1>, scalar_prefetch = 0 : i64, scratch_operands = 0 : i64, tpu.core_type = #tpu.core_type<tc>, window_params = [{transform_indices = @transform_0, window_bounds = array<i64: 16, 32>}, {transform_indices = @transform_1, window_bounds = array<i64: 128, 32>}, {transform_indices = @transform_2, window_bounds = array<i64: 1, 128>}, {transform_indices = @transform_3, window_bounds = array<i64: 16, 128>}]} {
    %c0 = arith.constant 0 : index
    %c0_0 = arith.constant 0 : index
    %0 = vector.load %arg2[%c0, %c0_0] : memref<16x32xf32, #tpu.memory_space<vmem>>, vector<16x32xf32>
    %c0_1 = arith.constant 0 : index
    %c0_2 = arith.constant 0 : index
    %1 = vector.load %arg3[%c0_1, %c0_2] : memref<128x32xf32, #tpu.memory_space<vmem>>, vector<128x32xf32>
    %cst = arith.constant dense<0.000000e+00> : vector<16x128xf32>
    %2 = tpu.matmul %0, %1, %cst {dimension_numbers = #tpu.dot_dimension_numbers<[1], [1], [0], [0], [0, 0, 1, 0], [], []>} : vector<16x32xf32>, vector<128x32xf32>, vector<16x128xf32> -> vector<16x128xf32>
    %c0_3 = arith.constant 0 : index
    %c0_4 = arith.constant 0 : index
    %3 = vector.load %arg4[%c0_3, %c0_4] : memref<1x128xf32, #tpu.memory_space<vmem>>, vector<1x128xf32>
    %4 = vector.broadcast %3 : vector<1x128xf32> to vector<16x128xf32>
    %5 = arith.addf %2, %4 : vector<16x128xf32>
    %c0_5 = arith.constant 0 : index
    %c0_6 = arith.constant 0 : index
    %6 = vector.load %arg5[%c0_5, %c0_6] : memref<16x128xf32, #tpu.memory_space<vmem>>, vector<16x128xf32>
    tpu.vector_store %arg5[%c0_5, %c0_6], %5 {strides = array<i32>} : memref<16x128xf32, #tpu.memory_space<vmem>>, vector<16x128xf32>,
    return
  }
  func.func @transform_0(%arg0: i32, %arg1: i32) -> (i32, i32) {
    %c0_i32 = arith.constant 0 : i32
    %c0_i32_0 = arith.constant 0 : i32
    return %arg0, %c0_i32 : i32, i32
  }
  func.func @transform_1(%arg0: i32, %arg1: i32) -> (i32, i32) {
    %c0_i32 = arith.constant 0 : i32
    %c0_i32_0 = arith.constant 0 : i32
    return %arg1, %c0_i32 : i32, i32
  }
  func.func @transform_2(%arg0: i32, %arg1: i32) -> (i32, i32) {
    %c0_i32 = arith.constant 0 : i32
    %c0_i32_0 = arith.constant 0 : i32
    return %c0_i32, %arg1 : i32, i32
  }
  func.func @transform_3(%arg0: i32, %arg1: i32) -> (i32, i32) {
    %c0_i32 = arith.constant 0 : i32
    return %arg0, %arg1 : i32, i32
  }
}

</mosaic_0001>

<llo_original>
// kernel: generator_forward.18
$region0: #{generator_forward.18}
  #allocation0 [shape = 'u32[]', space=smem, size = 0x4, offset = 0x4, fixed_abs, tag = 'smem constant byte address 0x4 - core index']
  #allocation1 [shape = 'u32[144,128]{1,0:T(1,128)}', space=vmem, size = 0x12000, scoped, tag = 'internal scratch']
  %s0 = inlined_call_operand.vmem [shape: f32[16,32], index: 0, kind: input, shape index: {}]
  %s1 = inlined_call_operand.vmem [shape: f32[16,32], index: 1, kind: input, shape index: {}]
  %s2 = inlined_call_operand.vmem [shape: f32[1,32], index: 2, kind: input, shape index: {}]
  %s3 = inlined_call_operand.vmem [shape: f32[1,32], index: 3, kind: input, shape index: {}]
  %s4 = inlined_call_operand.vmem [shape: f32[16,32], index: 4, kind: output, shape index: {}]
  %s5 = sld [smem:[#allocation0]]
  $region26: #{generator_forward.18} parent=0
    _
  %s7 = ssub.s32 1, %s5
  %s8 = scalar_select 0, %s7, %s5
  // Predicated region
  $region2: #{generator_forward.18} parent=0 // pred_check
    _
  $region3: #{generator_forward.18} parent=0 // pred_check_branch
    %10 = sbr.rel (0) target = $region5
  $region4: #{generator_forward.18} parent=0 // pred_region
    _
  $region5: #{generator_forward.18} parent=0 // pred_fallthru
    _
  // Predicated region
  $region6: #{generator_forward.18} parent=0 // pred_check
    _
  $region7: #{generator_forward.18} parent=0 // pred_check_branch
    %12 = sbr.rel (0) target = $region9
  $region8: #{generator_forward.18} parent=0 // pred_region
    _
  $region9: #{generator_forward.18} parent=0 // pred_fallthru
    _
  // Predicated region
  $region10: #{generator_forward.18} parent=0 // pred_check
    _
  $region11: #{generator_forward.18} parent=0 // pred_check_branch
    %14 = sbr.rel (0) target = $region13
  $region12: #{generator_forward.18} parent=0 // pred_region
    _
  $region13: #{generator_forward.18} parent=0 // pred_fallthru
    _
  // Predicated region
  $region14: #{generator_forward.18} parent=0 // pred_check
    _
  $region15: #{generator_forward.18} parent=0 // pred_check_branch
    %16 = sbr.rel (0) target = $region17
  $region16: #{generator_forward.18} parent=0 // pred_region
    _
  $region17: #{generator_forward.18} parent=0 // pred_fallthru
    _
  %v17 = vld [vmem:[%s0] sm:$0xff]
  %v18 = vld [vmem:[%s0 + $0x8] sm:$0xff]
  %v19 = vld [vmem:[%s1] sm:$0xff]
  %v20 = vld [vmem:[%s1 + $0x8] sm:$0xff]
  %v21 = vadd.f32 %v17, %v19
  %v22 = vadd.f32 %v18, %v20
  %vm23 = vcmask 261120
  %v24 = vsel %vm23, %v21, 0.0
  %25 = vadd.xlane.f32.xlu0 %v24
  %v26 = vpop.xlane.xlu0 %25
  %v27 = vsel %vm23, %v22, 0.0
  %28 = vadd.xlane.f32.xlu0 %v27
  %v29 = vpop.xlane.xlu0 %28
  %v30 = vrcp.pop 32.0
  %v31 = vmul.f32 %v26, %v30
  %v32 = vmul.f32 %v29, %v30
  %v33 = vsub.f32 %v21, %v31
  %v34 = vsub.f32 %v22, %v32
  %v35 = vmul.f32 %v33, %v33
  %v36 = vmul.f32 %v34, %v34
  %v37 = vsel %vm23, %v35, 0.0
  %38 = vadd.xlane.f32.xlu0 %v37
  %v39 = vpop.xlane.xlu0 %38
  %v40 = vsel %vm23, %v36, 0.0
  %41 = vadd.xlane.f32.xlu0 %v40
  %v42 = vpop.xlane.xlu0 %41
  %v43 = vmul.f32 %v39, %v30
  %v44 = vmul.f32 %v42, %v30
  %v45 = vadd.f32 %v43, 1e-05
  %v46 = vadd.f32 %v44, 1e-05
  %v47 = vrsqrt.pop %v45
  %v48 = vrsqrt.pop %v46
  %v49 = vmul.f32 %v33, %v47
  %v50 = vmul.f32 %v34, %v48
  %v51 = vld [vmem:[%s2] sm:$0x1]
  %v53 = vlaneseq
  %v54 = vshrl.u32 %v53, 7
  %v55 = vsub.s32 0, %v54
  %v56 = vrot.slane %v51, %v55
  %v58 = vmul.f32 %v49, %v56
  %v59 = vmul.f32 %v50, %v56
  %v60 = vld [vmem:[%s3] sm:$0x1]
  %v62 = vlaneseq
  %v63 = vshrl.u32 %v62, 7
  %v64 = vsub.s32 0, %v63
  %v65 = vrot.slane %v60, %v64
  %v67 = vadd.f32 %v58, %v65
  %v68 = vadd.f32 %v59, %v65
  %69 = vst.msk [vmem:[%s4] sm:$0xff] %vm23, %v67
  %70 = vst.msk [vmem:[%s4 + $0x8] sm:$0xff] %vm23, %v68
  // Predicated region
  $region18: #{generator_forward.18} parent=0 // pred_check
    _
  $region19: #{generator_forward.18} parent=0 // pred_check_branch
    %72 = sbr.rel (0) target = $region21
  $region20: #{generator_forward.18} parent=0 // pred_region
    _
  $region21: #{generator_forward.18} parent=0 // pred_fallthru
    _
  // Predicated region
  $region22: #{generator_forward.18} parent=0 // pred_check
    _
  $region23: #{generator_forward.18} parent=0 // pred_check_branch
    %74 = sbr.rel (0) target = $region25
  $region24: #{generator_forward.18} parent=0 // pred_region
    _
  $region25: #{generator_forward.18} parent=0 // pred_fallthru
    _

// kernel: generator_forward.17
$region0: #{generator_forward.17}
  #allocation0 [shape = 'u32[]', space=smem, size = 0x4, offset = 0x4, fixed_abs, tag = 'smem constant byte address 0x4 - core index']
  #allocation1 [shape = 'u32[144,128]{1,0:T(1,128)}', space=vmem, size = 0x12000, scoped, tag = 'internal scratch']
  %s0 = inlined_call_operand.vmem [shape: f32[16,32], index: 0, kind: input, shape index: {}]
  %s1 = inlined_call_operand.vmem [shape: f32[32,32], index: 1, kind: input, shape index: {}]
  %s2 = inlined_call_operand.vmem [shape: f32[1,32], index: 2, kind: input, shape index: {}]
  %s3 = inlined_call_operand.vmem [shape: f32[16,32], index: 3, kind: output, shape index: {}]
  %s4 = sld [smem:[#allocation0]]
  $region22: #{generator_forward.17} parent=0
    _
  %s6 = ssub.s32 1, %s4
  %s7 = scalar_select 0, %s6, %s4
  // Predicated region
  $region2: #{generator_forward.17} parent=0 // pred_check
    _
  $region3: #{generator_forward.17} parent=0 // pred_check_branch
    %9 = sbr.rel (0) target = $region5
  $region4: #{generator_forward.17} parent=0 // pred_region
    _
  $region5: #{generator_forward.17} parent=0 // pred_fallthru
    _
  // Predicated region
  $region6: #{generator_forward.17} parent=0 // pred_check
    _
  $region7: #{generator_forward.17} parent=0 // pred_check_branch
    %11 = sbr.rel (0) target = $region9
  $region8: #{generator_forward.17} parent=0 // pred_region
    _
  $region9: #{generator_forward.17} parent=0 // pred_fallthru
    _
  // Predicated region
  $region10: #{generator_forward.17} parent=0 // pred_check
    _
  $region11: #{generator_forward.17} parent=0 // pred_check_branch
    %13 = sbr.rel (0) target = $region13
  $region12: #{generator_forward.17} parent=0 // pred_region
    _
  $region13: #{generator_forward.17} parent=0 // pred_fallthru
    _
  %v14 = vld [vmem:[%s0] sm:$0xff]
  %v15 = vld [vmem:[%s0 + $0x8] sm:$0xff]
  %v16 = vld [vmem:[%s1] sm:$0xff]
  %v17 = vld [vmem:[%s1 + $0x8] sm:$0xff]
  %v18 = vld [vmem:[%s1 + $0x10] sm:$0xff]
  %v19 = vld [vmem:[%s1 + $0x18] sm:$0xff]
  %v20 = vld [vmem:[%s2] sm:$0x1]
  %v22 = vlaneseq
  %v23 = vshrl.u32 %v22, 7
  %v24 = vsub.s32 0, %v23
  %v25 = vrot.slane %v20, %v24
  %vm27 = vcmask 261120
  %v29 = vsel %vm27, %v14, 0
  %v32 = vsel %vm27, %v15, 0
  %34 = vmatprep.subr.mxu0 0.0
  %35 = vmatpush1.msra.mxu0 0.0
  %36 = vmatprep.subr.mxu0 0.0
  %37 = vmatpush1.msra.mxu0 0.0
  %38 = vmatprep.subr.mxu0 0.0
  %39 = vmatpush1.msra.mxu0 0.0
  %40 = vmatprep.subr.mxu0 0.0
  %41 = vmatpush1.msra.mxu0 0.0
  %42 = vmatprep.subr.mxu0 0.0
  %43 = vmatpush1.msra.mxu0 0.0
  %44 = vmatprep.subr.mxu0 0.0
  %45 = vmatpush1.msra.mxu0 0.0
  %46 = vmatprep.subr.mxu0 0.0
  %47 = vmatpush1.msra.mxu0 0.0
  %48 = vmatprep.subr.mxu0 0.0
  %49 = vmatpush1.msra.mxu0 0.0
  %50 = vmatprep.subr.mxu0 0.0
  %51 = vmatpush1.msra.mxu0 0.0
  %52 = vmatprep.subr.mxu0 0.0
  %53 = vmatpush1.msra.mxu0 0.0
  %54 = vmatprep.subr.mxu0 0.0
  %55 = vmatpush1.msra.mxu0 0.0
  %56 = vmatprep.subr.mxu0 0.0
  %57 = vmatpush1.msra.mxu0 0.0
  %58 = vmatprep.subr.mxu0 0.0
  %59 = vmatpush1.msra.mxu0 %v19
  %60 = vmatprep.subr.mxu0 0.0
  %61 = vmatpush1.msra.mxu0 %v18
  %62 = vmatprep.subr.mxu0 0.0
  %63 = vmatpush1.msra.mxu0 %v17
  %64 = vmatprep.subr.mxu0 0.0
  %65 = vmatpush1.msra.mxu0 %v16
  %66 = vmatprep.subr.mxu0 0.0
  %67 = vmatpush2.msra.mxu0 0.0
  %68 = vmatprep.subr.mxu0 0.0
  %69 = vmatpush2.msra.mxu0 0.0
  %70 = vmatprep.subr.mxu0 0.0
  %71 = vmatpush2.msra.mxu0 0.0
  %72 = vmatprep.subr.mxu0 0.0
  %73 = vmatpush2.msra.mxu0 0.0
  %74 = vmatprep.subr.mxu0 0.0
  %75 = vmatpush2.msra.mxu0 0.0
  %76 = vmatprep.subr.mxu0 0.0
  %77 = vmatpush2.msra.mxu0 0.0
  %78 = vmatprep.subr.mxu0 0.0
  %79 = vmatpush2.msra.mxu0 0.0
  %80 = vmatprep.subr.mxu0 0.0
  %81 = vmatpush2.msra.mxu0 0.0
  %82 = vmatprep.subr.mxu0 0.0
  %83 = vmatpush2.msra.mxu0 0.0
  %84 = vmatprep.subr.mxu0 0.0
  %85 = vmatpush2.msra.mxu0 0.0
  %86 = vmatprep.subr.mxu0 0.0
  %87 = vmatpush2.msra.mxu0 0.0
  %88 = vmatprep.subr.mxu0 0.0
  %89 = vmatpush2.msra.mxu0 0.0
  %90 = vmatprep.subr.mxu0 0.0
  %91 = vmatpush2.msra.mxu0 0.0
  %92 = vmatprep.subr.mxu0 0.0
  %93 = vmatpush2.msra.mxu0 0.0
  %94 = vmatprep.subr.mxu0 0.0
  %95 = vmatpush2.msra.mxu0 0.0
  %96 = vmatprep.subr.mxu0 0.0
  %97 = vmatpush2.msra.mxu0 0.0
  %98 = vmatprep.mubr.f32.mxu0 0.0
  %99 = vmatmul.mubr.f32.gmra.mxu0 %v29
  %v100 = vpop.f32.mrf.mxu0
  %v101 = vadd.f32 %v25, %v100
  %v102 = vpop.f32.mrf.mxu0
  %103 = vmatprep.mubr.f32.mxu0 0.0
  %104 = vmatmul.mubr.f32.gmra.mxu0 %v32
  %v105 = vpop.f32.mrf.mxu0
  %v106 = vadd.f32 %v25, %v105
  %v107 = vpop.f32.mrf.mxu0
  %108 = vdwg.mxu0
  %109 = vst.msk [vmem:[%s3] sm:$0xff] %vm27, %v101
  %110 = vst.msk [vmem:[%s3 + $0x8] sm:$0xff] %vm27, %v106
  // Predicated region
  $region14: #{generator_forward.17} parent=0 // pred_check
    _
  $region15: #{generator_forward.17} parent=0 // pred_check_branch
    %112 = sbr.rel (0) target = $region17
  $region16: #{generator_forward.17} parent=0 // pred_region
    _
  $region17: #{generator_forward.17} parent=0 // pred_fallthru
    _
  // Predicated region
  $region18: #{generator_forward.17} parent=0 // pred_check
    _
  $region19: #{generator_forward.17} parent=0 // pred_check_branch
    %114 = sbr.rel (0) target = $region21
  $region20: #{generator_forward.17} parent=0 // pred_region
    _
  $region21: #{generator_forward.17} parent=0 // pred_fallthru
    _

// kernel: generator_forward.15
$region0: #{generator_forward.15}
  #allocation0 [shape = 'u32[]', space=smem, size = 0x4, offset = 0x4, fixed_abs, tag = 'smem constant byte address 0x4 - core index']
  #allocation1 [shape = 'u32[144,128]{1,0:T(1,128)}', space=vmem, size = 0x12000, scoped, tag = 'internal scratch']
  %s0 = inlined_call_operand.vmem [shape: f32[16,32], index: 0, kind: input, shape index: {}]
  %s1 = inlined_call_operand.vmem [shape: f32[32,96], index: 1, kind: input, shape index: {}]
  %s2 = inlined_call_operand.vmem [shape: f32[1,96], index: 2, kind: input, shape index: {}]
  %s3 = inlined_call_operand.vmem [shape: f32[16,96], index: 3, kind: output, shape index: {}]
  %s4 = sld [smem:[#allocation0]]
  $region22: #{generator_forward.15} parent=0
    _
  %s6 = ssub.s32 1, %s4
  %s7 = scalar_select 0, %s6, %s4
  // Predicated region
  $region2: #{generator_forward.15} parent=0 // pred_check
    _
  $region3: #{generator_forward.15} parent=0 // pred_check_branch
    %9 = sbr.rel (0) target = $region5
  $region4: #{generator_forward.15} parent=0 // pred_region
    _
  $region5: #{generator_forward.15} parent=0 // pred_fallthru
    _
  // Predicated region
  $region6: #{generator_forward.15} parent=0 // pred_check
    _
  $region7: #{generator_forward.15} parent=0 // pred_check_branch
    %11 = sbr.rel (0) target = $region9
  $region8: #{generator_forward.15} parent=0 // pred_region
    _
  $region9: #{generator_forward.15} parent=0 // pred_fallthru
    _
  // Predicated region
  $region10: #{generator_forward.15} parent=0 // pred_check
    _
  $region11: #{generator_forward.15} parent=0 // pred_check_branch
    %13 = sbr.rel (0) target = $region13
  $region12: #{generator_forward.15} parent=0 // pred_region
    _
  $region13: #{generator_forward.15} parent=0 // pred_fallthru
    _
  %v14 = vld [vmem:[%s0] sm:$0xff]
  %v15 = vld [vmem:[%s0 + $0x8] sm:$0xff]
  %v16 = vld [vmem:[%s1] sm:$0xff]
  %v17 = vld [vmem:[%s1 + $0x8] sm:$0xff]
  %v18 = vld [vmem:[%s1 + $0x10] sm:$0xff]
  %v19 = vld [vmem:[%s1 + $0x18] sm:$0xff]
  %v20 = vld [vmem:[%s2] sm:$0x1]
  %v22 = vlaneseq
  %v23 = vshrl.u32 %v22, 7
  %v24 = vsub.s32 0, %v23
  %v25 = vrot.slane %v20, %v24
  %vm27 = vcmask 261120
  %v29 = vsel %vm27, %v14, 0
  %v32 = vsel %vm27, %v15, 0
  %34 = vmatprep.subr.mxu0 0.0
  %35 = vmatpush1.msra.mxu0 0.0
  %36 = vmatprep.subr.mxu0 0.0
  %37 = vmatpush1.msra.mxu0 0.0
  %38 = vmatprep.subr.mxu0 0.0
  %39 = vmatpush1.msra.mxu0 0.0
  %40 = vmatprep.subr.mxu0 0.0
  %41 = vmatpush1.msra.mxu0 0.0
  %42 = vmatprep.subr.mxu0 0.0
  %43 = vmatpush1.msra.mxu0 0.0
  %44 = vmatprep.subr.mxu0 0.0
  %45 = vmatpush1.msra.mxu0 0.0
  %46 = vmatprep.subr.mxu0 0.0
  %47 = vmatpush1.msra.mxu0 0.0
  %48 = vmatprep.subr.mxu0 0.0
  %49 = vmatpush1.msra.mxu0 0.0
  %50 = vmatprep.subr.mxu0 0.0
  %51 = vmatpush1.msra.mxu0 0.0
  %52 = vmatprep.subr.mxu0 0.0
  %53 = vmatpush1.msra.mxu0 0.0
  %54 = vmatprep.subr.mxu0 0.0
  %55 = vmatpush1.msra.mxu0 0.0
  %56 = vmatprep.subr.mxu0 0.0
  %57 = vmatpush1.msra.mxu0 0.0
  %58 = vmatprep.subr.mxu0 0.0
  %59 = vmatpush1.msra.mxu0 %v19
  %60 = vmatprep.subr.mxu0 0.0
  %61 = vmatpush1.msra.mxu0 %v18
  %62 = vmatprep.subr.mxu0 0.0
  %63 = vmatpush1.msra.mxu0 %v17
  %64 = vmatprep.subr.mxu0 0.0
  %65 = vmatpush1.msra.mxu0 %v16
  %66 = vmatprep.subr.mxu0 0.0
  %67 = vmatpush2.msra.mxu0 0.0
  %68 = vmatprep.subr.mxu0 0.0
  %69 = vmatpush2.msra.mxu0 0.0
  %70 = vmatprep.subr.mxu0 0.0
  %71 = vmatpush2.msra.mxu0 0.0
  %72 = vmatprep.subr.mxu0 0.0
  %73 = vmatpush2.msra.mxu0 0.0
  %74 = vmatprep.subr.mxu0 0.0
  %75 = vmatpush2.msra.mxu0 0.0
  %76 = vmatprep.subr.mxu0 0.0
  %77 = vmatpush2.msra.mxu0 0.0
  %78 = vmatprep.subr.mxu0 0.0
  %79 = vmatpush2.msra.mxu0 0.0
  %80 = vmatprep.subr.mxu0 0.0
  %81 = vmatpush2.msra.mxu0 0.0
  %82 = vmatprep.subr.mxu0 0.0
  %83 = vmatpush2.msra.mxu0 0.0
  %84 = vmatprep.subr.mxu0 0.0
  %85 = vmatpush2.msra.mxu0 0.0
  %86 = vmatprep.subr.mxu0 0.0
  %87 = vmatpush2.msra.mxu0 0.0
  %88 = vmatprep.subr.mxu0 0.0
  %89 = vmatpush2.msra.mxu0 0.0
  %90 = vmatprep.subr.mxu0 0.0
  %91 = vmatpush2.msra.mxu0 0.0
  %92 = vmatprep.subr.mxu0 0.0
  %93 = vmatpush2.msra.mxu0 0.0
  %94 = vmatprep.subr.mxu0 0.0
  %95 = vmatpush2.msra.mxu0 0.0
  %96 = vmatprep.subr.mxu0 0.0
  %97 = vmatpush2.msra.mxu0 0.0
  %98 = vmatprep.mubr.f32.mxu0 0.0
  %99 = vmatmul.mubr.f32.gmra.mxu0 %v29
  %v100 = vpop.f32.mrf.mxu0
  %v101 = vadd.f32 %v25, %v100
  %v102 = vpop.f32.mrf.mxu0
  %103 = vmatprep.mubr.f32.mxu0 0.0
  %104 = vmatmul.mubr.f32.gmra.mxu0 %v32
  %v105 = vpop.f32.mrf.mxu0
  %v106 = vadd.f32 %v25, %v105
  %v107 = vpop.f32.mrf.mxu0
  %108 = vdwg.mxu0
  %vm109 = vcmask 785408
  %110 = vst.msk [vmem:[%s3] sm:$0xff] %vm109, %v101
  %111 = vst.msk [vmem:[%s3 + $0x8] sm:$0xff] %vm109, %v106
  // Predicated region
  $region14: #{generator_forward.15} parent=0 // pred_check
    _
  $region15: #{generator_forward.15} parent=0 // pred_check_branch
    %113 = sbr.rel (0) target = $region17
  $region16: #{generator_forward.15} parent=0 // pred_region
    _
  $region17: #{generator_forward.15} parent=0 // pred_fallthru
    _
  // Predicated region
  $region18: #{generator_forward.15} parent=0 // pred_check
    _
  $region19: #{generator_forward.15} parent=0 // pred_check_branch
    %115 = sbr.rel (0) target = $region21
  $region20: #{generator_forward.15} parent=0 // pred_region
    _
  $region21: #{generator_forward.15} parent=0 // pred_fallthru
    _

// kernel: generator_forward.16
$region0: #{generator_forward.16}
  #allocation0 [shape = 'u32[]', space=smem, size = 0x4, offset = 0x4, fixed_abs, tag = 'smem constant byte address 0x4 - core index']
  #allocation1 [shape = 'u32[144,128]{1,0:T(1,128)}', space=vmem, size = 0x12000, scoped, tag = 'internal scratch']
  %s0 = inlined_call_operand.vmem [shape: f32[2,8,96], index: 0, kind: input, shape index: {}]
  %s1 = inlined_call_operand.vmem [shape: f32[2,1,8], index: 1, kind: input, shape index: {}]
  %s2 = inlined_call_operand.vmem [shape: f32[2,8,32], index: 2, kind: output, shape index: {}]
  %s3 = sld [smem:[#allocation0]]
  $region41: #{generator_forward.16} parent=0
    _
  %s5 = ssub.s32 1, %s3
  %s6 = scalar_select 0, %s5, %s3
  loop: start=0, step=1, limit=4
  $region2: #{generator_forward.16} parent=0 // loop_pre_header
    _
  $region3: #{generator_forward.16} parent=0 // loop_header
    %s8 = sphi 0, %s12
    %p9 = scmp.ge.s32.totalorder %s8, 4
    %s18 = sphi 0, %s20
    %s21 = sphi 0, %s18
    %s22 = sphi 0, %s21
    %s38 = sphi 0, %s22
    %s44 = sphi 0, %s46
    %s47 = sphi 0, %s44
    %s48 = sphi 0, %s47
    %s64 = sphi 0, %s48
    %s70 = sphi 0, %s72
    %s73 = sphi 0, %s70
    %s74 = sphi 0, %s73
    %s90 = sphi 0, %s74
  $region4: #{generator_forward.16} parent=0 // loop_header_branch
    %11 = sbr.rel (%p9) target = $region8
  $region5: #{generator_forward.16} parent=0 // loop_body
    %s13 = ssub.s32 %s8, 1
    %s14 = ssub.s32 %s8, 2
    %s15 = sadd.s32 %s8, 1
    %s16 = ssub.s32 %s8, %s15
    %p17 = scmp.eq.s32.totalorder %s16, 0
    %s19 = sadd.s32 %s18, 1
    %s20 = scalar_select %p17, %s18, %s19
    %p23 = pneg %p17
    %p24 = scmp.eq.s32.totalorder %s8, 1
    %p25 = por %p23, %p24
    %p26 = scmp.ne.s32.totalorder %s18, %s21
    %p27 = scmp.eq.s32.totalorder %s8, 0
    %p28 = por %p26, %p27
    %p29 = scmp.ne.s32.totalorder %s18, %s21
    %p30 = scmp.eq.s32.totalorder %s13, 1
    %p31 = por %p29, %p30
    %p32 = scmp.ne.s32.totalorder %s21, %s22
    %p33 = scmp.eq.s32.totalorder %s13, 0
    %p34 = por %p32, %p33
    %p35 = scmp.ne.s32.totalorder %s21, %s22
    %p36 = scmp.eq.s32.totalorder %s14, 1
    %p37 = por %p35, %p36
    %p39 = scmp.ne.s32.totalorder %s22, %s38
    %p40 = scmp.eq.s32.totalorder %s14, 0
    %p41 = por %p39, %p40
    %s42 = ssub.s32 %s8, %s15
    %p43 = scmp.eq.s32.totalorder %s42, 0
    %s45 = sadd.s32 %s44, 1
    %s46 = scalar_select %p43, %s44, %s45
    %p49 = pneg %p43
    %p50 = scmp.eq.s32.totalorder %s8, 1
    %p51 = por %p49, %p50
    %p52 = scmp.ne.s32.totalorder %s44, %s47
    %p53 = scmp.eq.s32.totalorder %s8, 0
    %p54 = por %p52, %p53
    %p55 = scmp.ne.s32.totalorder %s44, %s47
    %p56 = scmp.eq.s32.totalorder %s13, 1
    %p57 = por %p55, %p56
    %p58 = scmp.ne.s32.totalorder %s47, %s48
    %p59 = scmp.eq.s32.totalorder %s13, 0
    %p60 = por %p58, %p59
    %p61 = scmp.ne.s32.totalorder %s47, %s48
    %p62 = scmp.eq.s32.totalorder %s14, 1
    %p63 = por %p61, %p62
    %p65 = scmp.ne.s32.totalorder %s48, %s64
    %p66 = scmp.eq.s32.totalorder %s14, 0
    %p67 = por %p65, %p66
    %s68 = ssub.s32 %s8, %s15
    %p69 = scmp.eq.s32.totalorder %s68, 0
    %s71 = sadd.s32 %s70, 1
    %s72 = scalar_select %p69, %s70, %s71
    %p75 = pneg %p69
    %p76 = scmp.eq.s32.totalorder %s8, 1
    %p77 = por %p75, %p76
    %p78 = scmp.ne.s32.totalorder %s70, %s73
    %p79 = scmp.eq.s32.totalorder %s8, 0
    %p80 = por %p78, %p79
    %p81 = scmp.ne.s32.totalorder %s70, %s73
    %p82 = scmp.eq.s32.totalorder %s13, 1
    %p83 = por %p81, %p82
    %p84 = scmp.ne.s32.totalorder %s73, %s74
    %p85 = scmp.eq.s32.totalorder %s13, 0
    %p86 = por %p84, %p85
    %p87 = scmp.ne.s32.totalorder %s73, %s74
    %p88 = scmp.eq.s32.totalorder %s14, 1
    %p89 = por %p87, %p88
    %p91 = scmp.ne.s32.totalorder %s74, %s90
    %p92 = scmp.eq.s32.totalorder %s14, 0
    %p93 = por %p91, %p92
    %p94 = scmp.le.s32.totalorder 1, %s8
    %p95 = scmp.lt.s32.totalorder %s8, 3
    %p96 = pnand %p94, %p95
    %p97 = pneg %p96
    // Predicated region
    $region9: #{generator_forward.16} parent=5 // pred_check
      _
    $region10: #{generator_forward.16} parent=5 // pred_check_branch
      %99 = sbr.rel (%p96) target = $region12
    $region11: #{generator_forward.16} parent=5 // pred_region
      %s100 = ssub.s32 %s8, 1
    $region12: #{generator_forward.16} parent=5 // pred_fallthru
      _
    %p101 = scmp.lt.s32.totalorder %s8, 2
    // Predicated region
    $region13: #{generator_forward.16} parent=5 // pred_check
      %p102 = pneg %p101
    $region14: #{generator_forward.16} parent=5 // pred_check_branch
      %104 = sbr.rel (%p102) target = $region16
    $region15: #{generator_forward.16} parent=5 // pred_region
      // Predicated region
      $region17: #{generator_forward.16} parent=15 // pred_check
        %p105 = pneg %p28
      $region18: #{generator_forward.16} parent=15 // pred_check_branch
        %107 = sbr.rel (%p105) target = $region20
      $region19: #{generator_forward.16} parent=15 // pred_region
        %p108 = scmp.lt.s32.totalorder %s8, 1
        %s109 = scalar_select %p108, %s8, 1
        %s110 = smul.addr %s109, 8
        %s111 = scalar_lea.vmem %s0, %s110
      $region20: #{generator_forward.16} parent=15 // pred_fallthru
        _
      // Predicated region
      $region21: #{generator_forward.16} parent=15 // pred_check
        %p112 = pneg %p54
      $region22: #{generator_forward.16} parent=15 // pred_check_branch
        %114 = sbr.rel (%p112) target = $region24
      $region23: #{generator_forward.16} parent=15 // pred_region
        %p115 = scmp.lt.s32.totalorder %s8, 1
        %s116 = scalar_select %p115, %s8, 1
        %s117 = scalar_lea.vmem %s1, %s116
      $region24: #{generator_forward.16} parent=15 // pred_fallthru
        _
    $region16: #{generator_forward.16} parent=5 // pred_fallthru
      _
    %p118 = scmp.le.s32.totalorder 1, %s8
    %p119 = scmp.lt.s32.totalorder %s8, 3
    %p120 = pnand %p118, %p119
    %p121 = pneg %p120
    // Predicated region
    $region25: #{generator_forward.16} parent=5 // pred_check
      _
    $region26: #{generator_forward.16} parent=5 // pred_check_branch
      %123 = sbr.rel (%p120) target = $region28
    $region27: #{generator_forward.16} parent=5 // pred_region
      %s124 = ssub.s32 %s8, 1
      %p125 = scmp.lt.s32.totalorder %s13, 1
      %s126 = scalar_select %p125, %s13, 1
      %s127 = smul.addr %s126, 8
      %s128 = scalar_lea.vmem %s0, %s127
      %p129 = pneg %p34
      %p130 = pneg %p31
      %p131 = scmp.lt.s32.totalorder %s13, 1
      %s132 = scalar_select %p131, %s13, 1
      %s133 = scalar_lea.vmem %s1, %s132
      %p134 = pneg %p60
      %p135 = pneg %p57
      %p136 = pneg %p86
      %p137 = pneg %p83
      %p138 = scmp.lt.s32.totalorder %s13, 1
      %s139 = scalar_select %p138, %s13, 1
      %s140 = smul.addr %s139, 8
      %s141 = scalar_lea.vmem %s2, %s140
      %p142 = scmp.lt.s32.totalorder %s13, 1
      %s143 = scalar_select %p142, %s13, 1
      %s144 = smul.addr %s143, 8
      %s145 = scalar_lea.vmem %s0, %s144
      %p146 = scmp.lt.s32.totalorder %s13, 1
      %s147 = scalar_select %p146, %s13, 1
      %s148 = scalar_lea.vmem %s1, %s147
      %p149 = scmp.lt.s32.totalorder %s13, 1
      %s150 = scalar_select %p149, %s13, 1
      %s151 = smul.addr %s150, 8
      %s152 = scalar_lea.vmem %s2, %s151
      %v153 = vld [vmem:[%s145] sm:$0xff]
      %v154 = vld [vmem:[%s148] sm:$0x1]
      %156 = vrot.lane.b32.xlu0 %v153, 96
      %v157 = vpop.permute.xlu0 %156
      %vm158 = vcmask 64512
      %v159 = vsel %vm158, %v153, 0
      %v161 = vsel %vm158, %v157, 0
      %163 = vmatprep.subr.mxu0 0.0
      %164 = vmatpush1.xpose.msra.mxu0 0.0
      %165 = vmatprep.subr.mxu0 0.0
      %166 = vmatpush1.xpose.msra.mxu0 0.0
      %167 = vmatprep.subr.mxu0 0.0
      %168 = vmatpush1.xpose.msra.mxu0 0.0
      %169 = vmatprep.subr.mxu0 0.0
      %170 = vmatpush1.xpose.msra.mxu0 0.0
      %171 = vmatprep.subr.mxu0 0.0
      %172 = vmatpush1.xpose.msra.mxu0 0.0
      %173 = vmatprep.subr.mxu0 0.0
      %174 = vmatpush1.xpose.msra.mxu0 0.0
      %175 = vmatprep.subr.mxu0 0.0
      %176 = vmatpush1.xpose.msra.mxu0 0.0
      %177 = vmatprep.subr.mxu0 0.0
      %178 = vmatpush1.xpose.msra.mxu0 0.0
      %179 = vmatprep.subr.mxu0 0.0
      %180 = vmatpush1.xpose.msra.mxu0 0.0
      %181 = vmatprep.subr.mxu0 0.0
      %182 = vmatpush1.xpose.msra.mxu0 0.0
      %183 = vmatprep.subr.mxu0 0.0
      %184 = vmatpush1.xpose.msra.mxu0 0.0
      %185 = vmatprep.subr.mxu0 0.0
      %186 = vmatpush1.xpose.msra.mxu0 0.0
      %187 = vmatprep.subr.mxu0 0.0
      %188 = vmatpush1.xpose.msra.mxu0 0.0
      %189 = vmatprep.subr.mxu0 0.0
      %190 = vmatpush1.xpose.msra.mxu0 0.0
      %191 = vmatprep.subr.mxu0 0.0
      %192 = vmatpush1.xpose.msra.mxu0 0.0
      %193 = vmatprep.subr.mxu0 0.0
      %194 = vmatpush1.xpose.msra.mxu0 %v161
      %195 = vmatprep.subr.mxu0 0.0
      %196 = vmatpush2.xpose.msra.mxu0 0.0
      %197 = vmatprep.subr.mxu0 0.0
      %198 = vmatpush2.xpose.msra.mxu0 0.0
      %199 = vmatprep.subr.mxu0 0.0
      %200 = vmatpush2.xpose.msra.mxu0 0.0
      %201 = vmatprep.subr.mxu0 0.0
      %202 = vmatpush2.xpose.msra.mxu0 0.0
      %203 = vmatprep.subr.mxu0 0.0
      %204 = vmatpush2.xpose.msra.mxu0 0.0
      %205 = vmatprep.subr.mxu0 0.0
      %206 = vmatpush2.xpose.msra.mxu0 0.0
      %207 = vmatprep.subr.mxu0 0.0
      %208 = vmatpush2.xpose.msra.mxu0 0.0
      %209 = vmatprep.subr.mxu0 0.0
      %210 = vmatpush2.xpose.msra.mxu0 0.0
      %211 = vmatprep.subr.mxu0 0.0
      %212 = vmatpush2.xpose.msra.mxu0 0.0
      %213 = vmatprep.subr.mxu0 0.0
      %214 = vmatpush2.xpose.msra.mxu0 0.0
      %215 = vmatprep.subr.mxu0 0.0
      %216 = vmatpush2.xpose.msra.mxu0 0.0
      %217 = vmatprep.subr.mxu0 0.0
      %218 = vmatpush2.xpose.msra.mxu0 0.0
      %219 = vmatprep.subr.mxu0 0.0
      %220 = vmatpush2.xpose.msra.mxu0 0.0
      %221 = vmatprep.subr.mxu0 0.0
      %222 = vmatpush2.xpose.msra.mxu0 0.0
      %223 = vmatprep.subr.mxu0 0.0
      %224 = vmatpush2.xpose.msra.mxu0 0.0
      %225 = vmatprep.subr.mxu0 0.0
      %226 = vmatpush2.xpose.msra.mxu0 0.0
      %227 = vmatprep.mubr.f32.mxu0 0.0
      %228 = vmatmul.mubr.f32.gmra.mxu0 %v159
      %v229 = vpop.f32.mrf.mxu0
      %v230 = vadd.f32 0.0, %v229
      %v231 = vpop.f32.mrf.mxu0
      %232 = vdwg.mxu0
      %v233 = vmul.f32 %v230, 0.35355338
      %v235 = vlaneseq
      %v236 = vshrl.u32 %v235, 7
      %v237 = vsub.s32 0, %v236
      %v238 = vrot.slane %v154, %v237
      %v240 = vadd.f32 %v233, %v238
      %v241 = vsel %vm158, %v240, -inf
      %242 = vmax.xlane.f32.xlu0 %v241
      %v243 = vpop.xlane.xlu0 %242
      %v244 = vsub.f32 %v240, %v243
      %v245 = vmul.f32 %v244, 1.442695
      %v246 = vpow.pop %v245
      %v247 = vsel %vm158, %v246, 0.0
      %248 = vadd.xlane.f32.xlu0 %v247
      %v249 = vpop.xlane.xlu0 %248
      %250 = vrot.lane.b32.xlu0 %v153, 64
      %v251 = vpop.permute.xlu0 %250
      %v254 = vsel %vm158, %v246, 0
      %256 = vmatprep.subr.mxu0 0.0
      %257 = vmatpush1.msra.mxu0 0.0
      %258 = vmatprep.subr.mxu0 0.0
      %259 = vmatpush1.msra.mxu0 0.0
      %260 = vmatprep.subr.mxu0 0.0
      %261 = vmatpush1.msra.mxu0 0.0
      %262 = vmatprep.subr.mxu0 0.0
      %263 = vmatpush1.msra.mxu0 0.0
      %264 = vmatprep.subr.mxu0 0.0
      %265 = vmatpush1.msra.mxu0 0.0
      %266 = vmatprep.subr.mxu0 0.0
      %267 = vmatpush1.msra.mxu0 0.0
      %268 = vmatprep.subr.mxu0 0.0
      %269 = vmatpush1.msra.mxu0 0.0
      %270 = vmatprep.subr.mxu0 0.0
      %271 = vmatpush1.msra.mxu0 0.0
      %272 = vmatprep.subr.mxu0 0.0
      %273 = vmatpush1.msra.mxu0 0.0
      %274 = vmatprep.subr.mxu0 0.0
      %275 = vmatpush1.msra.mxu0 0.0
      %276 = vmatprep.subr.mxu0 0.0
      %277 = vmatpush1.msra.mxu0 0.0
      %278 = vmatprep.subr.mxu0 0.0
      %279 = vmatpush1.msra.mxu0 0.0
      %280 = vmatprep.subr.mxu0 0.0
      %281 = vmatpush1.msra.mxu0 0.0
      %282 = vmatprep.subr.mxu0 0.0
      %283 = vmatpush1.msra.mxu0 0.0
      %284 = vmatprep.subr.mxu0 0.0
      %285 = vmatpush1.msra.mxu0 0.0
      %286 = vmatprep.subr.mxu0 0.0
      %287 = vmatpush1.msra.mxu0 %v251
      %288 = vmatprep.subr.mxu0 0.0
      %289 = vmatpush2.msra.mxu0 0.0
      %290 = vmatprep.subr.mxu0 0.0
      %291 = vmatpush2.msra.mxu0 0.0
      %292 = vmatprep.subr.mxu0 0.0
      %293 = vmatpush2.msra.mxu0 0.0
      %294 = vmatprep.subr.mxu0 0.0
      %295 = vmatpush2.msra.mxu0 0.0
      %296 = vmatprep.subr.mxu0 0.0
      %297 = vmatpush2.msra.mxu0 0.0
      %298 = vmatprep.subr.mxu0 0.0
      %299 = vmatpush2.msra.mxu0 0.0
      %300 = vmatprep.subr.mxu0 0.0
      %301 = vmatpush2.msra.mxu0 0.0
      %302 = vmatprep.subr.mxu0 0.0
      %303 = vmatpush2.msra.mxu0 0.0
      %304 = vmatprep.subr.mxu0 0.0
      %305 = vmatpush2.msra.mxu0 0.0
      %306 = vmatprep.subr.mxu0 0.0
      %307 = vmatpush2.msra.mxu0 0.0
      %308 = vmatprep.subr.mxu0 0.0
      %309 = vmatpush2.msra.mxu0 0.0
      %310 = vmatprep.subr.mxu0 0.0
      %311 = vmatpush2.msra.mxu0 0.0
      %312 = vmatprep.subr.mxu0 0.0
      %313 = vmatpush2.msra.mxu0 0.0
      %314 = vmatprep.subr.mxu0 0.0
      %315 = vmatpush2.msra.mxu0 0.0
      %316 = vmatprep.subr.mxu0 0.0
      %317 = vmatpush2.msra.mxu0 0.0
      %318 = vmatprep.subr.mxu0 0.0
      %319 = vmatpush2.msra.mxu0 0.0
      %320 = vmatprep.mubr.f32.mxu0 0.0
      %321 = vmatmul.mubr.f32.gmra.mxu0 %v254
      %v322 = vpop.f32.mrf.mxu0
      %v323 = vadd.f32 0.0, %v322
      %v324 = vpop.f32.mrf.mxu0
      %325 = vdwg.mxu0
      %v326 = vrcp.pop %v249
      %v327 = vmul.f32 %v323, %v326
      %328 = vrot.lane.b32.xlu0 %v153, 120
      %v329 = vpop.permute.xlu0 %328
      %330 = vrot.lane.b32.xlu0 %v153, 88
      %v331 = vpop.permute.xlu0 %330
      %v332 = vsel %vm158, %v329, 0
      %v334 = vsel %vm158, %v331, 0
      %336 = vmatprep.subr.mxu0 0.0
      %337 = vmatpush1.xpose.msra.mxu0 0.0
      %338 = vmatprep.subr.mxu0 0.0
      %339 = vmatpush1.xpose.msra.mxu0 0.0
      %340 = vmatprep.subr.mxu0 0.0
      %341 = vmatpush1.xpose.msra.mxu0 0.0
      %342 = vmatprep.subr.mxu0 0.0
      %343 = vmatpush1.xpose.msra.mxu0 0.0
      %344 = vmatprep.subr.mxu0 0.0
      %345 = vmatpush1.xpose.msra.mxu0 0.0
      %346 = vmatprep.subr.mxu0 0.0
      %347 = vmatpush1.xpose.msra.mxu0 0.0
      %348 = vmatprep.subr.mxu0 0.0
      %349 = vmatpush1.xpose.msra.mxu0 0.0
      %350 = vmatprep.subr.mxu0 0.0
      %351 = vmatpush1.xpose.msra.mxu0 0.0
      %352 = vmatprep.subr.mxu0 0.0
      %353 = vmatpush1.xpose.msra.mxu0 0.0
      %354 = vmatprep.subr.mxu0 0.0
      %355 = vmatpush1.xpose.msra.mxu0 0.0
      %356 = vmatprep.subr.mxu0 0.0
      %357 = vmatpush1.xpose.msra.mxu0 0.0
      %358 = vmatprep.subr.mxu0 0.0
      %359 = vmatpush1.xpose.msra.mxu0 0.0
      %360 = vmatprep.subr.mxu0 0.0
      %361 = vmatpush1.xpose.msra.mxu0 0.0
      %362 = vmatprep.subr.mxu0 0.0
      %363 = vmatpush1.xpose.msra.mxu0 0.0
      %364 = vmatprep.subr.mxu0 0.0
      %365 = vmatpush1.xpose.msra.mxu0 0.0
      %366 = vmatprep.subr.mxu0 0.0
      %367 = vmatpush1.xpose.msra.mxu0 %v334
      %368 = vmatprep.subr.mxu0 0.0
      %369 = vmatpush2.xpose.msra.mxu0 0.0
      %370 = vmatprep.subr.mxu0 0.0
      %371 = vmatpush2.xpose.msra.mxu0 0.0
      %372 = vmatprep.subr.mxu0 0.0
      %373 = vmatpush2.xpose.msra.mxu0 0.0
      %374 = vmatprep.subr.mxu0 0.0
      %375 = vmatpush2.xpose.msra.mxu0 0.0
      %376 = vmatprep.subr.mxu0 0.0
      %377 = vmatpush2.xpose.msra.mxu0 0.0
      %378 = vmatprep.subr.mxu0 0.0
      %379 = vmatpush2.xpose.msra.mxu0 0.0
      %380 = vmatprep.subr.mxu0 0.0
      %381 = vmatpush2.xpose.msra.mxu0 0.0
      %382 = vmatprep.subr.mxu0 0.0
      %383 = vmatpush2.xpose.msra.mxu0 0.0
      %384 = vmatprep.subr.mxu0 0.0
      %385 = vmatpush2.xpose.msra.mxu0 0.0
      %386 = vmatprep.subr.mxu0 0.0
      %387 = vmatpush2.xpose.msra.mxu0 0.0
      %388 = vmatprep.subr.mxu0 0.0
      %389 = vmatpush2.xpose.msra.mxu0 0.0
      %390 = vmatprep.subr.mxu0 0.0
      %391 = vmatpush2.xpose.msra.mxu0 0.0
      %392 = vmatprep.subr.mxu0 0.0
      %393 = vmatpush2.xpose.msra.mxu0 0.0
      %394 = vmatprep.subr.mxu0 0.0
      %395 = vmatpush2.xpose.msra.mxu0 0.0
      %396 = vmatprep.subr.mxu0 0.0
      %397 = vmatpush2.xpose.msra.mxu0 0.0
      %398 = vmatprep.subr.mxu0 0.0
      %399 = vmatpush2.xpose.msra.mxu0 0.0
      %400 = vmatprep.mubr.f32.mxu0 0.0
      %401 = vmatmul.mubr.f32.gmra.mxu0 %v332
      %v402 = vpop.f32.mrf.mxu0
      %v403 = vadd.f32 0.0, %v402
      %v404 = vpop.f32.mrf.mxu0
      %405 = vdwg.mxu0
      %v406 = vmul.f32 %v403, 0.35355338
      %v407 = vadd.f32 %v406, %v238
      %v408 = vsel %vm158, %v407, -inf
      %409 = vmax.xlane.f32.xlu0 %v408
      %v410 = vpop.xlane.xlu0 %409
      %v411 = vsub.f32 %v407, %v410
      %v412 = vmul.f32 %v411, 1.442695
      %v413 = vpow.pop %v412
      %v414 = vsel %vm158, %v413, 0.0
      %415 = vadd.xlane.f32.xlu0 %v414
      %v416 = vpop.xlane.xlu0 %415
      %417 = vrot.lane.b32.xlu0 %v153, 56
      %v418 = vpop.permute.xlu0 %417
      %v421 = vsel %vm158, %v413, 0
      %423 = vmatprep.subr.mxu0 0.0
      %424 = vmatpush1.msra.mxu0 0.0
      %425 = vmatprep.subr.mxu0 0.0
      %426 = vmatpush1.msra.mxu0 0.0
      %427 = vmatprep.subr.mxu0 0.0
      %428 = vmatpush1.msra.mxu0 0.0
      %429 = vmatprep.subr.mxu0 0.0
      %430 = vmatpush1.msra.mxu0 0.0
      %431 = vmatprep.subr.mxu0 0.0
      %432 = vmatpush1.msra.mxu0 0.0
      %433 = vmatprep.subr.mxu0 0.0
      %434 = vmatpush1.msra.mxu0 0.0
      %435 = vmatprep.subr.mxu0 0.0
      %436 = vmatpush1.msra.mxu0 0.0
      %437 = vmatprep.subr.mxu0 0.0
      %438 = vmatpush1.msra.mxu0 0.0
      %439 = vmatprep.subr.mxu0 0.0
      %440 = vmatpush1.msra.mxu0 0.0
      %441 = vmatprep.subr.mxu0 0.0
      %442 = vmatpush1.msra.mxu0 0.0
      %443 = vmatprep.subr.mxu0 0.0
      %444 = vmatpush1.msra.mxu0 0.0
      %445 = vmatprep.subr.mxu0 0.0
      %446 = vmatpush1.msra.mxu0 0.0
      %447 = vmatprep.subr.mxu0 0.0
      %448 = vmatpush1.msra.mxu0 0.0
      %449 = vmatprep.subr.mxu0 0.0
      %450 = vmatpush1.msra.mxu0 0.0
      %451 = vmatprep.subr.mxu0 0.0
      %452 = vmatpush1.msra.mxu0 0.0
      %453 = vmatprep.subr.mxu0 0.0
      %454 = vmatpush1.msra.mxu0 %v418
      %455 = vmatprep.subr.mxu0 0.0
      %456 = vmatpush2.msra.mxu0 0.0
      %457 = vmatprep.subr.mxu0 0.0
      %458 = vmatpush2.msra.mxu0 0.0
      %459 = vmatprep.subr.mxu0 0.0
      %460 = vmatpush2.msra.mxu0 0.0
      %461 = vmatprep.subr.mxu0 0.0
      %462 = vmatpush2.msra.mxu0 0.0
      %463 = vmatprep.subr.mxu0 0.0
      %464 = vmatpush2.msra.mxu0 0.0
      %465 = vmatprep.subr.mxu0 0.0
      %466 = vmatpush2.msra.mxu0 0.0
      %467 = vmatprep.subr.mxu0 0.0
      %468 = vmatpush2.msra.mxu0 0.0
      %469 = vmatprep.subr.mxu0 0.0
      %470 = vmatpush2.msra.mxu0 0.0
      %471 = vmatprep.subr.mxu0 0.0
      %472 = vmatpush2.msra.mxu0 0.0
      %473 = vmatprep.subr.mxu0 0.0
      %474 = vmatpush2.msra.mxu0 0.0
      %475 = vmatprep.subr.mxu0 0.0
      %476 = vmatpush2.msra.mxu0 0.0
      %477 = vmatprep.subr.mxu0 0.0
      %478 = vmatpush2.msra.mxu0 0.0
      %479 = vmatprep.subr.mxu0 0.0
      %480 = vmatpush2.msra.mxu0 0.0
      %481 = vmatprep.subr.mxu0 0.0
      %482 = vmatpush2.msra.mxu0 0.0
      %483 = vmatprep.subr.mxu0 0.0
      %484 = vmatpush2.msra.mxu0 0.0
      %485 = vmatprep.subr.mxu0 0.0
      %486 = vmatpush2.msra.mxu0 0.0
      %487 = vmatprep.mubr.f32.mxu0 0.0
      %488 = vmatmul.mubr.f32.gmra.mxu0 %v421
      %v489 = vpop.f32.mrf.mxu0
      %v490 = vadd.f32 0.0, %v489
      %v491 = vpop.f32.mrf.mxu0
      %492 = vdwg.mxu0
      %v493 = vrcp.pop %v416
      %v494 = vmul.f32 %v490, %v493
      %495 = vrot.lane.b32.xlu0 %v153, 112
      %v496 = vpop.permute.xlu0 %495
      %497 = vrot.lane.b32.xlu0 %v153, 80
      %v498 = vpop.permute.xlu0 %497
      %v499 = vsel %vm158, %v496, 0
      %v501 = vsel %vm158, %v498, 0
      %503 = vmatprep.subr.mxu0 0.0
      %504 = vmatpush1.xpose.msra.mxu0 0.0
      %505 = vmatprep.subr.mxu0 0.0
      %506 = vmatpush1.xpose.msra.mxu0 0.0
      %507 = vmatprep.subr.mxu0 0.0
      %508 = vmatpush1.xpose.msra.mxu0 0.0
      %509 = vmatprep.subr.mxu0 0.0
      %510 = vmatpush1.xpose.msra.mxu0 0.0
      %511 = vmatprep.subr.mxu0 0.0
      %512 = vmatpush1.xpose.msra.mxu0 0.0
      %513 = vmatprep.subr.mxu0 0.0
      %514 = vmatpush1.xpose.msra.mxu0 0.0
      %515 = vmatprep.subr.mxu0 0.0
      %516 = vmatpush1.xpose.msra.mxu0 0.0
      %517 = vmatprep.subr.mxu0 0.0
      %518 = vmatpush1.xpose.msra.mxu0 0.0
      %519 = vmatprep.subr.mxu0 0.0
      %520 = vmatpush1.xpose.msra.mxu0 0.0
      %521 = vmatprep.subr.mxu0 0.0
      %522 = vmatpush1.xpose.msra.mxu0 0.0
      %523 = vmatprep.subr.mxu0 0.0
      %524 = vmatpush1.xpose.msra.mxu0 0.0
      %525 = vmatprep.subr.mxu0 0.0
      %526 = vmatpush1.xpose.msra.mxu0 0.0
      %527 = vmatprep.subr.mxu0 0.0
      %528 = vmatpush1.xpose.msra.mxu0 0.0
      %529 = vmatprep.subr.mxu0 0.0
      %530 = vmatpush1.xpose.msra.mxu0 0.0
      %531 = vmatprep.subr.mxu0 0.0
      %532 = vmatpush1.xpose.msra.mxu0 0.0
      %533 = vmatprep.subr.mxu0 0.0
      %534 = vmatpush1.xpose.msra.mxu0 %v501
      %535 = vmatprep.subr.mxu0 0.0
      %536 = vmatpush2.xpose.msra.mxu0 0.0
      %537 = vmatprep.subr.mxu0 0.0
      %538 = vmatpush2.xpose.msra.mxu0 0.0
      %539 = vmatprep.subr.mxu0 0.0
      %540 = vmatpush2.xpose.msra.mxu0 0.0
      %541 = vmatprep.subr.mxu0 0.0
      %542 = vmatpush2.xpose.msra.mxu0 0.0
      %543 = vmatprep.subr.mxu0 0.0
      %544 = vmatpush2.xpose.msra.mxu0 0.0
      %545 = vmatprep.subr.mxu0 0.0
      %546 = vmatpush2.xpose.msra.mxu0 0.0
      %547 = vmatprep.subr.mxu0 0.0
      %548 = vmatpush2.xpose.msra.mxu0 0.0
      %549 = vmatprep.subr.mxu0 0.0
      %550 = vmatpush2.xpose.msra.mxu0 0.0
      %551 = vmatprep.subr.mxu0 0.0
      %552 = vmatpush2.xpose.msra.mxu0 0.0
      %553 = vmatprep.subr.mxu0 0.0
      %554 = vmatpush2.xpose.msra.mxu0 0.0
      %555 = vmatprep.subr.mxu0 0.0
      %556 = vmatpush2.xpose.msra.mxu0 0.0
      %557 = vmatprep.subr.mxu0 0.0
      %558 = vmatpush2.xpose.msra.mxu0 0.0
      %559 = vmatprep.subr.mxu0 0.0
      %560 = vmatpush2.xpose.msra.mxu0 0.0
      %561 = vmatprep.subr.mxu0 0.0
      %562 = vmatpush2.xpose.msra.mxu0 0.0
      %563 = vmatprep.subr.mxu0 0.0
      %564 = vmatpush2.xpose.msra.mxu0 0.0
      %565 = vmatprep.subr.mxu0 0.0
      %566 = vmatpush2.xpose.msra.mxu0 0.0
      %567 = vmatprep.mubr.f32.mxu0 0.0
      %568 = vmatmul.mubr.f32.gmra.mxu0 %v499
      %v569 = vpop.f32.mrf.mxu0
      %v570 = vadd.f32 0.0, %v569
      %v571 = vpop.f32.mrf.mxu0
      %572 = vdwg.mxu0
      %v573 = vmul.f32 %v570, 0.35355338
      %v574 = vadd.f32 %v573, %v238
      %v575 = vsel %vm158, %v574, -inf
      %576 = vmax.xlane.f32.xlu0 %v575
      %v577 = vpop.xlane.xlu0 %576
      %v578 = vsub.f32 %v574, %v577
      %v579 = vmul.f32 %v578, 1.442695
      %v580 = vpow.pop %v579
      %v581 = vsel %vm158, %v580, 0.0
      %582 = vadd.xlane.f32.xlu0 %v581
      %v583 = vpop.xlane.xlu0 %582
      %584 = vrot.lane.b32.xlu0 %v153, 48
      %v585 = vpop.permute.xlu0 %584
      %v588 = vsel %vm158, %v580, 0
      %590 = vmatprep.subr.mxu0 0.0
      %591 = vmatpush1.msra.mxu0 0.0
      %592 = vmatprep.subr.mxu0 0.0
      %593 = vmatpush1.msra.mxu0 0.0
      %594 = vmatprep.subr.mxu0 0.0
      %595 = vmatpush1.msra.mxu0 0.0
      %596 = vmatprep.subr.mxu0 0.0
      %597 = vmatpush1.msra.mxu0 0.0
      %598 = vmatprep.subr.mxu0 0.0
      %599 = vmatpush1.msra.mxu0 0.0
      %600 = vmatprep.subr.mxu0 0.0
      %601 = vmatpush1.msra.mxu0 0.0
      %602 = vmatprep.subr.mxu0 0.0
      %603 = vmatpush1.msra.mxu0 0.0
      %604 = vmatprep.subr.mxu0 0.0
      %605 = vmatpush1.msra.mxu0 0.0
      %606 = vmatprep.subr.mxu0 0.0
      %607 = vmatpush1.msra.mxu0 0.0
      %608 = vmatprep.subr.mxu0 0.0
      %609 = vmatpush1.msra.mxu0 0.0
      %610 = vmatprep.subr.mxu0 0.0
      %611 = vmatpush1.msra.mxu0 0.0
      %612 = vmatprep.subr.mxu0 0.0
      %613 = vmatpush1.msra.mxu0 0.0
      %614 = vmatprep.subr.mxu0 0.0
      %615 = vmatpush1.msra.mxu0 0.0
      %616 = vmatprep.subr.mxu0 0.0
      %617 = vmatpush1.msra.mxu0 0.0
      %618 = vmatprep.subr.mxu0 0.0
      %619 = vmatpush1.msra.mxu0 0.0
      %620 = vmatprep.subr.mxu0 0.0
      %621 = vmatpush1.msra.mxu0 %v585
      %622 = vmatprep.subr.mxu0 0.0
      %623 = vmatpush2.msra.mxu0 0.0
      %624 = vmatprep.subr.mxu0 0.0
      %625 = vmatpush2.msra.mxu0 0.0
      %626 = vmatprep.subr.mxu0 0.0
      %627 = vmatpush2.msra.mxu0 0.0
      %628 = vmatprep.subr.mxu0 0.0
      %629 = vmatpush2.msra.mxu0 0.0
      %630 = vmatprep.subr.mxu0 0.0
      %631 = vmatpush2.msra.mxu0 0.0
      %632 = vmatprep.subr.mxu0 0.0
      %633 = vmatpush2.msra.mxu0 0.0
      %634 = vmatprep.subr.mxu0 0.0
      %635 = vmatpush2.msra.mxu0 0.0
      %636 = vmatprep.subr.mxu0 0.0
      %637 = vmatpush2.msra.mxu0 0.0
      %638 = vmatprep.subr.mxu0 0.0
      %639 = vmatpush2.msra.mxu0 0.0
      %640 = vmatprep.subr.mxu0 0.0
      %641 = vmatpush2.msra.mxu0 0.0
      %642 = vmatprep.subr.mxu0 0.0
      %643 = vmatpush2.msra.mxu0 0.0
      %644 = vmatprep.subr.mxu0 0.0
      %645 = vmatpush2.msra.mxu0 0.0
      %646 = vmatprep.subr.mxu0 0.0
      %647 = vmatpush2.msra.mxu0 0.0
      %648 = vmatprep.subr.mxu0 0.0
      %649 = vmatpush2.msra.mxu0 0.0
      %650 = vmatprep.subr.mxu0 0.0
      %651 = vmatpush2.msra.mxu0 0.0
      %652 = vmatprep.subr.mxu0 0.0
      %653 = vmatpush2.msra.mxu0 0.0
      %654 = vmatprep.mubr.f32.mxu0 0.0
      %655 = vmatmul.mubr.f32.gmra.mxu0 %v588
      %v656 = vpop.f32.mrf.mxu0
      %v657 = vadd.f32 0.0, %v656
      %v658 = vpop.f32.mrf.mxu0
      %659 = vdwg.mxu0
      %v660 = vrcp.pop %v583
      %v661 = vmul.f32 %v657, %v660
      %662 = vrot.lane.b32.xlu0 %v153, 104
      %v663 = vpop.permute.xlu0 %662
      %664 = vrot.lane.b32.xlu0 %v153, 72
      %v665 = vpop.permute.xlu0 %664
      %v666 = vsel %vm158, %v663, 0
      %v668 = vsel %vm158, %v665, 0
      %670 = vmatprep.subr.mxu0 0.0
      %671 = vmatpush1.xpose.msra.mxu0 0.0
      %672 = vmatprep.subr.mxu0 0.0
      %673 = vmatpush1.xpose.msra.mxu0 0.0
      %674 = vmatprep.subr.mxu0 0.0
      %675 = vmatpush1.xpose.msra.mxu0 0.0
      %676 = vmatprep.subr.mxu0 0.0
      %677 = vmatpush1.xpose.msra.mxu0 0.0
      %678 = vmatprep.subr.mxu0 0.0
      %679 = vmatpush1.xpose.msra.mxu0 0.0
      %680 = vmatprep.subr.mxu0 0.0
      %681 = vmatpush1.xpose.msra.mxu0 0.0
      %682 = vmatprep.subr.mxu0 0.0
      %683 = vmatpush1.xpose.msra.mxu0 0.0
      %684 = vmatprep.subr.mxu0 0.0
      %685 = vmatpush1.xpose.msra.mxu0 0.0
      %686 = vmatprep.subr.mxu0 0.0
      %687 = vmatpush1.xpose.msra.mxu0 0.0
      %688 = vmatprep.subr.mxu0 0.0
      %689 = vmatpush1.xpose.msra.mxu0 0.0
      %690 = vmatprep.subr.mxu0 0.0
      %691 = vmatpush1.xpose.msra.mxu0 0.0
      %692 = vmatprep.subr.mxu0 0.0
      %693 = vmatpush1.xpose.msra.mxu0 0.0
      %694 = vmatprep.subr.mxu0 0.0
      %695 = vmatpush1.xpose.msra.mxu0 0.0
      %696 = vmatprep.subr.mxu0 0.0
      %697 = vmatpush1.xpose.msra.mxu0 0.0
      %698 = vmatprep.subr.mxu0 0.0
      %699 = vmatpush1.xpose.msra.mxu0 0.0
      %700 = vmatprep.subr.mxu0 0.0
      %701 = vmatpush1.xpose.msra.mxu0 %v668
      %702 = vmatprep.subr.mxu0 0.0
      %703 = vmatpush2.xpose.msra.mxu0 0.0
      %704 = vmatprep.subr.mxu0 0.0
      %705 = vmatpush2.xpose.msra.mxu0 0.0
      %706 = vmatprep.subr.mxu0 0.0
      %707 = vmatpush2.xpose.msra.mxu0 0.0
      %708 = vmatprep.subr.mxu0 0.0
      %709 = vmatpush2.xpose.msra.mxu0 0.0
      %710 = vmatprep.subr.mxu0 0.0
      %711 = vmatpush2.xpose.msra.mxu0 0.0
      %712 = vmatprep.subr.mxu0 0.0
      %713 = vmatpush2.xpose.msra.mxu0 0.0
      %714 = vmatprep.subr.mxu0 0.0
      %715 = vmatpush2.xpose.msra.mxu0 0.0
      %716 = vmatprep.subr.mxu0 0.0
      %717 = vmatpush2.xpose.msra.mxu0 0.0
      %718 = vmatprep.subr.mxu0 0.0
      %719 = vmatpush2.xpose.msra.mxu0 0.0
      %720 = vmatprep.subr.mxu0 0.0
      %721 = vmatpush2.xpose.msra.mxu0 0.0
      %722 = vmatprep.subr.mxu0 0.0
      %723 = vmatpush2.xpose.msra.mxu0 0.0
      %724 = vmatprep.subr.mxu0 0.0
      %725 = vmatpush2.xpose.msra.mxu0 0.0
      %726 = vmatprep.subr.mxu0 0.0
      %727 = vmatpush2.xpose.msra.mxu0 0.0
      %728 = vmatprep.subr.mxu0 0.0
      %729 = vmatpush2.xpose.msra.mxu0 0.0
      %730 = vmatprep.subr.mxu0 0.0
      %731 = vmatpush2.xpose.msra.mxu0 0.0
      %732 = vmatprep.subr.mxu0 0.0
      %733 = vmatpush2.xpose.msra.mxu0 0.0
      %734 = vmatprep.mubr.f32.mxu0 0.0
      %735 = vmatmul.mubr.f32.gmra.mxu0 %v666
      %v736 = vpop.f32.mrf.mxu0
      %v737 = vadd.f32 0.0, %v736
      %v738 = vpop.f32.mrf.mxu0
      %739 = vdwg.mxu0
      %v740 = vmul.f32 %v737, 0.35355338
      %v741 = vadd.f32 %v740, %v238
      %v742 = vsel %vm158, %v741, -inf
      %743 = vmax.xlane.f32.xlu0 %v742
      %v744 = vpop.xlane.xlu0 %743
      %v745 = vsub.f32 %v741, %v744
      %v746 = vmul.f32 %v745, 1.442695
      %v747 = vpow.pop %v746
      %v748 = vsel %vm158, %v747, 0.0
      %749 = vadd.xlane.f32.xlu0 %v748
      %v750 = vpop.xlane.xlu0 %749
      %751 = vrot.lane.b32.xlu0 %v153, 40
      %v752 = vpop.permute.xlu0 %751
      %v755 = vsel %vm158, %v747, 0
      %757 = vmatprep.subr.mxu0 0.0
      %758 = vmatpush1.msra.mxu0 0.0
      %759 = vmatprep.subr.mxu0 0.0
      %760 = vmatpush1.msra.mxu0 0.0
      %761 = vmatprep.subr.mxu0 0.0
      %762 = vmatpush1.msra.mxu0 0.0
      %763 = vmatprep.subr.mxu0 0.0
      %764 = vmatpush1.msra.mxu0 0.0
      %765 = vmatprep.subr.mxu0 0.0
      %766 = vmatpush1.msra.mxu0 0.0
      %767 = vmatprep.subr.mxu0 0.0
      %768 = vmatpush1.msra.mxu0 0.0
      %769 = vmatprep.subr.mxu0 0.0
      %770 = vmatpush1.msra.mxu0 0.0
      %771 = vmatprep.subr.mxu0 0.0
      %772 = vmatpush1.msra.mxu0 0.0
      %773 = vmatprep.subr.mxu0 0.0
      %774 = vmatpush1.msra.mxu0 0.0
      %775 = vmatprep.subr.mxu0 0.0
      %776 = vmatpush1.msra.mxu0 0.0
      %777 = vmatprep.subr.mxu0 0.0
      %778 = vmatpush1.msra.mxu0 0.0
      %779 = vmatprep.subr.mxu0 0.0
      %780 = vmatpush1.msra.mxu0 0.0
      %781 = vmatprep.subr.mxu0 0.0
      %782 = vmatpush1.msra.mxu0 0.0
      %783 = vmatprep.subr.mxu0 0.0
      %784 = vmatpush1.msra.mxu0 0.0
      %785 = vmatprep.subr.mxu0 0.0
      %786 = vmatpush1.msra.mxu0 0.0
      %787 = vmatprep.subr.mxu0 0.0
      %788 = vmatpush1.msra.mxu0 %v752
      %789 = vmatprep.subr.mxu0 0.0
      %790 = vmatpush2.msra.mxu0 0.0
      %791 = vmatprep.subr.mxu0 0.0
      %792 = vmatpush2.msra.mxu0 0.0
      %793 = vmatprep.subr.mxu0 0.0
      %794 = vmatpush2.msra.mxu0 0.0
      %795 = vmatprep.subr.mxu0 0.0
      %796 = vmatpush2.msra.mxu0 0.0
      %797 = vmatprep.subr.mxu0 0.0
      %798 = vmatpush2.msra.mxu0 0.0
      %799 = vmatprep.subr.mxu0 0.0
      %800 = vmatpush2.msra.mxu0 0.0
      %801 = vmatprep.subr.mxu0 0.0
      %802 = vmatpush2.msra.mxu0 0.0
      %803 = vmatprep.subr.mxu0 0.0
      %804 = vmatpush2.msra.mxu0 0.0
      %805 = vmatprep.subr.mxu0 0.0
      %806 = vmatpush2.msra.mxu0 0.0
      %807 = vmatprep.subr.mxu0 0.0
      %808 = vmatpush2.msra.mxu0 0.0
      %809 = vmatprep.subr.mxu0 0.0
      %810 = vmatpush2.msra.mxu0 0.0
      %811 = vmatprep.subr.mxu0 0.0
      %812 = vmatpush2.msra.mxu0 0.0
      %813 = vmatprep.subr.mxu0 0.0
      %814 = vmatpush2.msra.mxu0 0.0
      %815 = vmatprep.subr.mxu0 0.0
      %816 = vmatpush2.msra.mxu0 0.0
      %817 = vmatprep.subr.mxu0 0.0
      %818 = vmatpush2.msra.mxu0 0.0
      %819 = vmatprep.subr.mxu0 0.0
      %820 = vmatpush2.msra.mxu0 0.0
      %821 = vmatprep.mubr.f32.mxu0 0.0
      %822 = vmatmul.mubr.f32.gmra.mxu0 %v755
      %v823 = vpop.f32.mrf.mxu0
      %v824 = vadd.f32 0.0, %v823
      %v825 = vpop.f32.mrf.mxu0
      %826 = vdwg.mxu0
      %v827 = vrcp.pop %v750
      %v828 = vmul.f32 %v824, %v827
      %830 = vrot.lane.b32.xlu0 %v494, 8
      %v831 = vpop.permute.xlu0 %830
      %834 = vrot.lane.b32.xlu0 %v661, 16
      %v835 = vpop.permute.xlu0 %834
      %838 = vrot.lane.b32.xlu0 %v828, 24
      %v839 = vpop.permute.xlu0 %838
      %v841 = vsel %vm158, %v327, %v831
      %vm842 = vcmask 130048
      %v843 = vsel %vm842, %v841, %v835
      %vm844 = vcmask 195584
      %v845 = vsel %vm844, %v843, %v839
      %vm846 = vcmask 261120
      %847 = vst.msk [vmem:[%s152] sm:$0xff] %vm846, %v845
      %p848 = scmp.lt.s32.totalorder %s13, 1
      %s849 = scalar_select %p848, %s13, 1
      %s850 = smul.addr %s849, 8
      %s851 = scalar_lea.vmem %s2, %s850
      // Predicated region
      $region29: #{generator_forward.16} parent=27 // pred_check
        %p852 = pneg %p83
      $region30: #{generator_forward.16} parent=27 // pred_check_branch
        %854 = sbr.rel (%p852) target = $region32
      $region31: #{generator_forward.16} parent=27 // pred_region
        _
      $region32: #{generator_forward.16} parent=27 // pred_fallthru
        _
    $region28: #{generator_forward.16} parent=5 // pred_fallthru
      _
    %p855 = scmp.le.s32.totalorder 2, %s8
    // Predicated region
    $region33: #{generator_forward.16} parent=5 // pred_check
      %p856 = pneg %p855
    $region34: #{generator_forward.16} parent=5 // pred_check_branch
      %858 = sbr.rel (%p856) target = $region36
    $region35: #{generator_forward.16} parent=5 // pred_region
      %s859 = ssub.s32 %s8, 2
      // Predicated region
      $region37: #{generator_forward.16} parent=35 // pred_check
        %p860 = pneg %p89
      $region38: #{generator_forward.16} parent=35 // pred_check_branch
        %862 = sbr.rel (%p860) target = $region40
      $region39: #{generator_forward.16} parent=35 // pred_region
        %p863 = scmp.lt.s32.totalorder %s14, 1
        %s864 = scalar_select %p863, %s14, 1
        %s865 = smul.addr %s864, 8
        %s866 = scalar_lea.vmem %s2, %s865
      $region40: #{generator_forward.16} parent=35 // pred_fallthru
        _
    $region36: #{generator_forward.16} parent=5 // pred_fallthru
      _
  $region6: #{generator_forward.16} parent=0 // loop_footer
    %s12 = sadd.s32 1, %s8
  $region7: #{generator_forward.16} parent=0 // loop_footer_branch
    %7 = sbr.rel target = $region3
  $region8: #{generator_forward.16} parent=0 // loop_exit
    _

// kernel: generator_forward.20
$region0: #{generator_forward.20}
  #allocation0 [shape = 'u32[]', space=smem, size = 0x4, offset = 0x4, fixed_abs, tag = 'smem constant byte address 0x4 - core index']
  #allocation1 [shape = 'u32[144,128]{1,0:T(1,128)}', space=vmem, size = 0x12000, scoped, tag = 'internal scratch']
  %s0 = inlined_call_operand.vmem [shape: f32[16,64], index: 0, kind: input, shape index: {}]
  %s1 = inlined_call_operand.vmem [shape: f32[64,32], index: 1, kind: input, shape index: {}]
  %s2 = inlined_call_operand.vmem [shape: f32[1,32], index: 2, kind: input, shape index: {}]
  %s3 = inlined_call_operand.vmem [shape: f32[16,32], index: 3, kind: output, shape index: {}]
  %s4 = sld [smem:[#allocation0]]
  $region22: #{generator_forward.20} parent=0
    _
  %s6 = ssub.s32 1, %s4
  %s7 = scalar_select 0, %s6, %s4
  // Predicated region
  $region2: #{generator_forward.20} parent=0 // pred_check
    _
  $region3: #{generator_forward.20} parent=0 // pred_check_branch
    %9 = sbr.rel (0) target = $region5
  $region4: #{generator_forward.20} parent=0 // pred_region
    _
  $region5: #{generator_forward.20} parent=0 // pred_fallthru
    _
  // Predicated region
  $region6: #{generator_forward.20} parent=0 // pred_check
    _
  $region7: #{generator_forward.20} parent=0 // pred_check_branch
    %11 = sbr.rel (0) target = $region9
  $region8: #{generator_forward.20} parent=0 // pred_region
    _
  $region9: #{generator_forward.20} parent=0 // pred_fallthru
    _
  // Predicated region
  $region10: #{generator_forward.20} parent=0 // pred_check
    _
  $region11: #{generator_forward.20} parent=0 // pred_check_branch
    %13 = sbr.rel (0) target = $region13
  $region12: #{generator_forward.20} parent=0 // pred_region
    _
  $region13: #{generator_forward.20} parent=0 // pred_fallthru
    _
  %v14 = vld [vmem:[%s0] sm:$0xff]
  %v15 = vld [vmem:[%s0 + $0x8] sm:$0xff]
  %v16 = vld [vmem:[%s1] sm:$0xff]
  %v17 = vld [vmem:[%s1 + $0x8] sm:$0xff]
  %v18 = vld [vmem:[%s1 + $0x10] sm:$0xff]
  %v19 = vld [vmem:[%s1 + $0x18] sm:$0xff]
  %v20 = vld [vmem:[%s1 + $0x20] sm:$0xff]
  %v21 = vld [vmem:[%s1 + $0x28] sm:$0xff]
  %v22 = vld [vmem:[%s1 + $0x30] sm:$0xff]
  %v23 = vld [vmem:[%s1 + $0x38] sm:$0xff]
  %v24 = vld [vmem:[%s2] sm:$0x1]
  %v26 = vlaneseq
  %v27 = vshrl.u32 %v26, 7
  %v28 = vsub.s32 0, %v27
  %v29 = vrot.slane %v24, %v28
  %vm31 = vcmask 523264
  %v33 = vsel %vm31, %v14, 0
  %v36 = vsel %vm31, %v15, 0
  %38 = vmatprep.subr.mxu0 0.0
  %39 = vmatpush1.msra.mxu0 0.0
  %40 = vmatprep.subr.mxu0 0.0
  %41 = vmatpush1.msra.mxu0 0.0
  %42 = vmatprep.subr.mxu0 0.0
  %43 = vmatpush1.msra.mxu0 0.0
  %44 = vmatprep.subr.mxu0 0.0
  %45 = vmatpush1.msra.mxu0 0.0
  %46 = vmatprep.subr.mxu0 0.0
  %47 = vmatpush1.msra.mxu0 0.0
  %48 = vmatprep.subr.mxu0 0.0
  %49 = vmatpush1.msra.mxu0 0.0
  %50 = vmatprep.subr.mxu0 0.0
  %51 = vmatpush1.msra.mxu0 0.0
  %52 = vmatprep.subr.mxu0 0.0
  %53 = vmatpush1.msra.mxu0 0.0
  %54 = vmatprep.subr.mxu0 0.0
  %55 = vmatpush1.msra.mxu0 %v23
  %56 = vmatprep.subr.mxu0 0.0
  %57 = vmatpush1.msra.mxu0 %v22
  %58 = vmatprep.subr.mxu0 0.0
  %59 = vmatpush1.msra.mxu0 %v21
  %60 = vmatprep.subr.mxu0 0.0
  %61 = vmatpush1.msra.mxu0 %v20
  %62 = vmatprep.subr.mxu0 0.0
  %63 = vmatpush1.msra.mxu0 %v19
  %64 = vmatprep.subr.mxu0 0.0
  %65 = vmatpush1.msra.mxu0 %v18
  %66 = vmatprep.subr.mxu0 0.0
  %67 = vmatpush1.msra.mxu0 %v17
  %68 = vmatprep.subr.mxu0 0.0
  %69 = vmatpush1.msra.mxu0 %v16
  %70 = vmatprep.subr.mxu0 0.0
  %71 = vmatpush2.msra.mxu0 0.0
  %72 = vmatprep.subr.mxu0 0.0
  %73 = vmatpush2.msra.mxu0 0.0
  %74 = vmatprep.subr.mxu0 0.0
  %75 = vmatpush2.msra.mxu0 0.0
  %76 = vmatprep.subr.mxu0 0.0
  %77 = vmatpush2.msra.mxu0 0.0
  %78 = vmatprep.subr.mxu0 0.0
  %79 = vmatpush2.msra.mxu0 0.0
  %80 = vmatprep.subr.mxu0 0.0
  %81 = vmatpush2.msra.mxu0 0.0
  %82 = vmatprep.subr.mxu0 0.0
  %83 = vmatpush2.msra.mxu0 0.0
  %84 = vmatprep.subr.mxu0 0.0
  %85 = vmatpush2.msra.mxu0 0.0
  %86 = vmatprep.subr.mxu0 0.0
  %87 = vmatpush2.msra.mxu0 0.0
  %88 = vmatprep.subr.mxu0 0.0
  %89 = vmatpush2.msra.mxu0 0.0
  %90 = vmatprep.subr.mxu0 0.0
  %91 = vmatpush2.msra.mxu0 0.0
  %92 = vmatprep.subr.mxu0 0.0
  %93 = vmatpush2.msra.mxu0 0.0
  %94 = vmatprep.subr.mxu0 0.0
  %95 = vmatpush2.msra.mxu0 0.0
  %96 = vmatprep.subr.mxu0 0.0
  %97 = vmatpush2.msra.mxu0 0.0
  %98 = vmatprep.subr.mxu0 0.0
  %99 = vmatpush2.msra.mxu0 0.0
  %100 = vmatprep.subr.mxu0 0.0
  %101 = vmatpush2.msra.mxu0 0.0
  %102 = vmatprep.mubr.f32.mxu0 0.0
  %103 = vmatmul.mubr.f32.gmra.mxu0 %v33
  %v104 = vpop.f32.mrf.mxu0
  %v105 = vadd.f32 %v29, %v104
  %v106 = vpop.f32.mrf.mxu0
  %107 = vmatprep.mubr.f32.mxu0 0.0
  %108 = vmatmul.mubr.f32.gmra.mxu0 %v36
  %v109 = vpop.f32.mrf.mxu0
  %v110 = vadd.f32 %v29, %v109
  %v111 = vpop.f32.mrf.mxu0
  %112 = vdwg.mxu0
  %vm113 = vcmask 261120
  %114 = vst.msk [vmem:[%s3] sm:$0xff] %vm113, %v105
  %115 = vst.msk [vmem:[%s3 + $0x8] sm:$0xff] %vm113, %v110
  // Predicated region
  $region14: #{generator_forward.20} parent=0 // pred_check
    _
  $region15: #{generator_forward.20} parent=0 // pred_check_branch
    %117 = sbr.rel (0) target = $region17
  $region16: #{generator_forward.20} parent=0 // pred_region
    _
  $region17: #{generator_forward.20} parent=0 // pred_fallthru
    _
  // Predicated region
  $region18: #{generator_forward.20} parent=0 // pred_check
    _
  $region19: #{generator_forward.20} parent=0 // pred_check_branch
    %119 = sbr.rel (0) target = $region21
  $region20: #{generator_forward.20} parent=0 // pred_region
    _
  $region21: #{generator_forward.20} parent=0 // pred_fallthru
    _

// kernel: generator_forward.19
$region0: #{generator_forward.19}
  #allocation0 [shape = 'u32[]', space=smem, size = 0x4, offset = 0x4, fixed_abs, tag = 'smem constant byte address 0x4 - core index']
  #allocation1 [shape = 'u32[144,128]{1,0:T(1,128)}', space=vmem, size = 0x12000, scoped, tag = 'internal scratch']
  %s0 = inlined_call_operand.vmem [shape: f32[16,32], index: 0, kind: input, shape index: {}]
  %s1 = inlined_call_operand.vmem [shape: f32[32,64], index: 1, kind: input, shape index: {}]
  %s2 = inlined_call_operand.vmem [shape: f32[1,64], index: 2, kind: input, shape index: {}]
  %s3 = inlined_call_operand.vmem [shape: f32[16,64], index: 3, kind: output, shape index: {}]
  %s4 = sld [smem:[#allocation0]]
  $region22: #{generator_forward.19} parent=0
    _
  %s6 = ssub.s32 1, %s4
  %s7 = scalar_select 0, %s6, %s4
  // Predicated region
  $region2: #{generator_forward.19} parent=0 // pred_check
    _
  $region3: #{generator_forward.19} parent=0 // pred_check_branch
    %9 = sbr.rel (0) target = $region5
  $region4: #{generator_forward.19} parent=0 // pred_region
    _
  $region5: #{generator_forward.19} parent=0 // pred_fallthru
    _
  // Predicated region
  $region6: #{generator_forward.19} parent=0 // pred_check
    _
  $region7: #{generator_forward.19} parent=0 // pred_check_branch
    %11 = sbr.rel (0) target = $region9
  $region8: #{generator_forward.19} parent=0 // pred_region
    _
  $region9: #{generator_forward.19} parent=0 // pred_fallthru
    _
  // Predicated region
  $region10: #{generator_forward.19} parent=0 // pred_check
    _
  $region11: #{generator_forward.19} parent=0 // pred_check_branch
    %13 = sbr.rel (0) target = $region13
  $region12: #{generator_forward.19} parent=0 // pred_region
    _
  $region13: #{generator_forward.19} parent=0 // pred_fallthru
    _
  %v14 = vld [vmem:[%s0] sm:$0xff]
  %v15 = vld [vmem:[%s0 + $0x8] sm:$0xff]
  %v16 = vld [vmem:[%s1] sm:$0xff]
  %v17 = vld [vmem:[%s1 + $0x8] sm:$0xff]
  %v18 = vld [vmem:[%s1 + $0x10] sm:$0xff]
  %v19 = vld [vmem:[%s1 + $0x18] sm:$0xff]
  %v20 = vld [vmem:[%s2] sm:$0x1]
  %v22 = vlaneseq
  %v23 = vshrl.u32 %v22, 7
  %v24 = vsub.s32 0, %v23
  %v25 = vrot.slane %v20, %v24
  %vm27 = vcmask 261120
  %v29 = vsel %vm27, %v14, 0
  %v32 = vsel %vm27, %v15, 0
  %34 = vmatprep.subr.mxu0 0.0
  %35 = vmatpush1.msra.mxu0 0.0
  %36 = vmatprep.subr.mxu0 0.0
  %37 = vmatpush1.msra.mxu0 0.0
  %38 = vmatprep.subr.mxu0 0.0
  %39 = vmatpush1.msra.mxu0 0.0
  %40 = vmatprep.subr.mxu0 0.0
  %41 = vmatpush1.msra.mxu0 0.0
  %42 = vmatprep.subr.mxu0 0.0
  %43 = vmatpush1.msra.mxu0 0.0
  %44 = vmatprep.subr.mxu0 0.0
  %45 = vmatpush1.msra.mxu0 0.0
  %46 = vmatprep.subr.mxu0 0.0
  %47 = vmatpush1.msra.mxu0 0.0
  %48 = vmatprep.subr.mxu0 0.0
  %49 = vmatpush1.msra.mxu0 0.0
  %50 = vmatprep.subr.mxu0 0.0
  %51 = vmatpush1.msra.mxu0 0.0
  %52 = vmatprep.subr.mxu0 0.0
  %53 = vmatpush1.msra.mxu0 0.0
  %54 = vmatprep.subr.mxu0 0.0
  %55 = vmatpush1.msra.mxu0 0.0
  %56 = vmatprep.subr.mxu0 0.0
  %57 = vmatpush1.msra.mxu0 0.0
  %58 = vmatprep.subr.mxu0 0.0
  %59 = vmatpush1.msra.mxu0 %v19
  %60 = vmatprep.subr.mxu0 0.0
  %61 = vmatpush1.msra.mxu0 %v18
  %62 = vmatprep.subr.mxu0 0.0
  %63 = vmatpush1.msra.mxu0 %v17
  %64 = vmatprep.subr.mxu0 0.0
  %65 = vmatpush1.msra.mxu0 %v16
  %66 = vmatprep.subr.mxu0 0.0
  %67 = vmatpush2.msra.mxu0 0.0
  %68 = vmatprep.subr.mxu0 0.0
  %69 = vmatpush2.msra.mxu0 0.0
  %70 = vmatprep.subr.mxu0 0.0
  %71 = vmatpush2.msra.mxu0 0.0
  %72 = vmatprep.subr.mxu0 0.0
  %73 = vmatpush2.msra.mxu0 0.0
  %74 = vmatprep.subr.mxu0 0.0
  %75 = vmatpush2.msra.mxu0 0.0
  %76 = vmatprep.subr.mxu0 0.0
  %77 = vmatpush2.msra.mxu0 0.0
  %78 = vmatprep.subr.mxu0 0.0
  %79 = vmatpush2.msra.mxu0 0.0
  %80 = vmatprep.subr.mxu0 0.0
  %81 = vmatpush2.msra.mxu0 0.0
  %82 = vmatprep.subr.mxu0 0.0
  %83 = vmatpush2.msra.mxu0 0.0
  %84 = vmatprep.subr.mxu0 0.0
  %85 = vmatpush2.msra.mxu0 0.0
  %86 = vmatprep.subr.mxu0 0.0
  %87 = vmatpush2.msra.mxu0 0.0
  %88 = vmatprep.subr.mxu0 0.0
  %89 = vmatpush2.msra.mxu0 0.0
  %90 = vmatprep.subr.mxu0 0.0
  %91 = vmatpush2.msra.mxu0 0.0
  %92 = vmatprep.subr.mxu0 0.0
  %93 = vmatpush2.msra.mxu0 0.0
  %94 = vmatprep.subr.mxu0 0.0
  %95 = vmatpush2.msra.mxu0 0.0
  %96 = vmatprep.subr.mxu0 0.0
  %97 = vmatpush2.msra.mxu0 0.0
  %98 = vmatprep.mubr.f32.mxu0 0.0
  %99 = vmatmul.mubr.f32.gmra.mxu0 %v29
  %v100 = vpop.f32.mrf.mxu0
  %v101 = vadd.f32 %v25, %v100
  %v102 = vpop.f32.mrf.mxu0
  %103 = vmatprep.mubr.f32.mxu0 0.0
  %104 = vmatmul.mubr.f32.gmra.mxu0 %v32
  %v105 = vpop.f32.mrf.mxu0
  %v106 = vadd.f32 %v25, %v105
  %v107 = vpop.f32.mrf.mxu0
  %108 = vdwg.mxu0
  %v109 = vmul.f32 %v101, 0.5
  %v110 = vmul.f32 %v106, 0.5
  %v111 = vmul.f32 %v101, 0.044715
  %v112 = vmul.f32 %v106, 0.044715
  %v113 = vmul.f32 %v111, %v101
  %v114 = vmul.f32 %v112, %v106
  %v115 = vmul.f32 %v113, %v101
  %v116 = vmul.f32 %v114, %v106
  %v117 = vadd.f32 %v101, %v115
  %v118 = vadd.f32 %v106, %v116
  %v119 = vmul.f32 %v117, 0.7978846
  %v120 = vmul.f32 %v118, 0.7978846
  %v121 = vtanh.pop %v119
  %v122 = vtanh.pop %v120
  %v123 = vadd.f32 %v121, 1.0
  %v124 = vadd.f32 %v122, 1.0
  %v125 = vmul.f32 %v109, %v123
  %v126 = vmul.f32 %v110, %v124
  %vm127 = vcmask 523264
  %128 = vst.msk [vmem:[%s3] sm:$0xff] %vm127, %v125
  %129 = vst.msk [vmem:[%s3 + $0x8] sm:$0xff] %vm127, %v126
  // Predicated region
  $region14: #{generator_forward.19} parent=0 // pred_check
    _
  $region15: #{generator_forward.19} parent=0 // pred_check_branch
    %131 = sbr.rel (0) target = $region17
  $region16: #{generator_forward.19} parent=0 // pred_region
    _
  $region17: #{generator_forward.19} parent=0 // pred_fallthru
    _
  // Predicated region
  $region18: #{generator_forward.19} parent=0 // pred_check
    _
  $region19: #{generator_forward.19} parent=0 // pred_check_branch
    %133 = sbr.rel (0) target = $region21
  $region20: #{generator_forward.19} parent=0 // pred_region
    _
  $region21: #{generator_forward.19} parent=0 // pred_fallthru
    _

// kernel: generator_forward.29
$region0: #{generator_forward.29}
  #allocation0 [shape = 'u32[]', space=smem, size = 0x4, offset = 0x4, fixed_abs, tag = 'smem constant byte address 0x4 - core index']
  #allocation1 [shape = 'u32[144,128]{1,0:T(1,128)}', space=vmem, size = 0x12000, scoped, tag = 'internal scratch']
  %s0 = inlined_call_operand.vmem [shape: f32[16,32], index: 0, kind: input, shape index: {}]
  %s1 = inlined_call_operand.vmem [shape: f32[128,32], index: 1, kind: input, shape index: {}]
  %s2 = inlined_call_operand.vmem [shape: f32[1,128], index: 2, kind: input, shape index: {}]
  %s3 = inlined_call_operand.vmem [shape: f32[16,128], index: 3, kind: output, shape index: {}]
  %s4 = sld [smem:[#allocation0]]
  $region22: #{generator_forward.29} parent=0
    _
  %s6 = ssub.s32 1, %s4
  %s7 = scalar_select 0, %s6, %s4
  // Predicated region
  $region2: #{generator_forward.29} parent=0 // pred_check
    _
  $region3: #{generator_forward.29} parent=0 // pred_check_branch
    %9 = sbr.rel (0) target = $region5
  $region4: #{generator_forward.29} parent=0 // pred_region
    _
  $region5: #{generator_forward.29} parent=0 // pred_fallthru
    _
  // Predicated region
  $region6: #{generator_forward.29} parent=0 // pred_check
    _
  $region7: #{generator_forward.29} parent=0 // pred_check_branch
    %11 = sbr.rel (0) target = $region9
  $region8: #{generator_forward.29} parent=0 // pred_region
    _
  $region9: #{generator_forward.29} parent=0 // pred_fallthru
    _
  // Predicated region
  $region10: #{generator_forward.29} parent=0 // pred_check
    _
  $region11: #{generator_forward.29} parent=0 // pred_check_branch
    %13 = sbr.rel (0) target = $region13
  $region12: #{generator_forward.29} parent=0 // pred_region
    _
  $region13: #{generator_forward.29} parent=0 // pred_fallthru
    _
  %v14 = vld [vmem:[%s0] sm:$0xff]
  %v15 = vld [vmem:[%s0 + $0x8] sm:$0xff]
  %v16 = vld [vmem:[%s1] sm:$0xff]
  %v17 = vld [vmem:[%s1 + $0x8] sm:$0xff]
  %v18 = vld [vmem:[%s1 + $0x10] sm:$0xff]
  %v19 = vld [vmem:[%s1 + $0x18] sm:$0xff]
  %v20 = vld [vmem:[%s1 + $0x20] sm:$0xff]
  %v21 = vld [vmem:[%s1 + $0x28] sm:$0xff]
  %v22 = vld [vmem:[%s1 + $0x30] sm:$0xff]
  %v23 = vld [vmem:[%s1 + $0x38] sm:$0xff]
  %v24 = vld [vmem:[%s1 + $0x40] sm:$0xff]
  %v25 = vld [vmem:[%s1 + $0x48] sm:$0xff]
  %v26 = vld [vmem:[%s1 + $0x50] sm:$0xff]
  %v27 = vld [vmem:[%s1 + $0x58] sm:$0xff]
  %v28 = vld [vmem:[%s1 + $0x60] sm:$0xff]
  %v29 = vld [vmem:[%s1 + $0x68] sm:$0xff]
  %v30 = vld [vmem:[%s1 + $0x70] sm:$0xff]
  %v31 = vld [vmem:[%s1 + $0x78] sm:$0xff]
  %v32 = vld [vmem:[%s2] sm:$0x1]
  %v34 = vlaneseq
  %v35 = vshrl.u32 %v34, 7
  %v36 = vsub.s32 0, %v35
  %v37 = vrot.slane %v32, %v36
  %vm39 = vcmask 261120
  %v41 = vsel %vm39, %v14, 0
  %v44 = vsel %vm39, %v15, 0
  %v47 = vsel %vm39, %v16, 0
  %v50 = vsel %vm39, %v17, 0
  %v53 = vsel %vm39, %v18, 0
  %v56 = vsel %vm39, %v19, 0
  %v59 = vsel %vm39, %v20, 0
  %v62 = vsel %vm39, %v21, 0
  %v65 = vsel %vm39, %v22, 0
  %v68 = vsel %vm39, %v23, 0
  %v71 = vsel %vm39, %v24, 0
  %v74 = vsel %vm39, %v25, 0
  %v77 = vsel %vm39, %v26, 0
  %v80 = vsel %vm39, %v27, 0
  %v83 = vsel %vm39, %v28, 0
  %v86 = vsel %vm39, %v29, 0
  %v89 = vsel %vm39, %v30, 0
  %v92 = vsel %vm39, %v31, 0
  %94 = vmatprep.subr.mxu0 0.0
  %95 = vmatpush1.xpose.msra.mxu0 %v92
  %96 = vmatprep.subr.mxu0 0.0
  %97 = vmatpush1.xpose.msra.mxu0 %v89
  %98 = vmatprep.subr.mxu0 0.0
  %99 = vmatpush1.xpose.msra.mxu0 %v86
  %100 = vmatprep.subr.mxu0 0.0
  %101 = vmatpush1.xpose.msra.mxu0 %v83
  %102 = vmatprep.subr.mxu0 0.0
  %103 = vmatpush1.xpose.msra.mxu0 %v80
  %104 = vmatprep.subr.mxu0 0.0
  %105 = vmatpush1.xpose.msra.mxu0 %v77
  %106 = vmatprep.subr.mxu0 0.0
  %107 = vmatpush1.xpose.msra.mxu0 %v74
  %108 = vmatprep.subr.mxu0 0.0
  %109 = vmatpush1.xpose.msra.mxu0 %v71
  %110 = vmatprep.subr.mxu0 0.0
  %111 = vmatpush1.xpose.msra.mxu0 %v68
  %112 = vmatprep.subr.mxu0 0.0
  %113 = vmatpush1.xpose.msra.mxu0 %v65
  %114 = vmatprep.subr.mxu0 0.0
  %115 = vmatpush1.xpose.msra.mxu0 %v62
  %116 = vmatprep.subr.mxu0 0.0
  %117 = vmatpush1.xpose.msra.mxu0 %v59
  %118 = vmatprep.subr.mxu0 0.0
  %119 = vmatpush1.xpose.msra.mxu0 %v56
  %120 = vmatprep.subr.mxu0 0.0
  %121 = vmatpush1.xpose.msra.mxu0 %v53
  %122 = vmatprep.subr.mxu0 0.0
  %123 = vmatpush1.xpose.msra.mxu0 %v50
  %124 = vmatprep.subr.mxu0 0.0
  %125 = vmatpush1.xpose.msra.mxu0 %v47
  %126 = vmatprep.subr.mxu0 0.0
  %127 = vmatpush2.xpose.msra.mxu0 0.0
  %128 = vmatprep.subr.mxu0 0.0
  %129 = vmatpush2.xpose.msra.mxu0 0.0
  %130 = vmatprep.subr.mxu0 0.0
  %131 = vmatpush2.xpose.msra.mxu0 0.0
  %132 = vmatprep.subr.mxu0 0.0
  %133 = vmatpush2.xpose.msra.mxu0 0.0
  %134 = vmatprep.subr.mxu0 0.0
  %135 = vmatpush2.xpose.msra.mxu0 0.0
  %136 = vmatprep.subr.mxu0 0.0
  %137 = vmatpush2.xpose.msra.mxu0 0.0
  %138 = vmatprep.subr.mxu0 0.0
  %139 = vmatpush2.xpose.msra.mxu0 0.0
  %140 = vmatprep.subr.mxu0 0.0
  %141 = vmatpush2.xpose.msra.mxu0 0.0
  %142 = vmatprep.subr.mxu0 0.0
  %143 = vmatpush2.xpose.msra.mxu0 0.0
  %144 = vmatprep.subr.mxu0 0.0
  %145 = vmatpush2.xpose.msra.mxu0 0.0
  %146 = vmatprep.subr.mxu0 0.0
  %147 = vmatpush2.xpose.msra.mxu0 0.0
  %148 = vmatprep.subr.mxu0 0.0
  %149 = vmatpush2.xpose.msra.mxu0 0.0
  %150 = vmatprep.subr.mxu0 0.0
  %151 = vmatpush2.xpose.msra.mxu0 0.0
  %152 = vmatprep.subr.mxu0 0.0
  %153 = vmatpush2.xpose.msra.mxu0 0.0
  %154 = vmatprep.subr.mxu0 0.0
  %155 = vmatpush2.xpose.msra.mxu0 0.0
  %156 = vmatprep.subr.mxu0 0.0
  %157 = vmatpush2.xpose.msra.mxu0 0.0
  %158 = vmatprep.mubr.f32.mxu0 0.0
  %159 = vmatmul.mubr.f32.gmra.mxu0 %v41
  %v160 = vpop.f32.mrf.mxu0
  %v161 = vadd.f32 %v37, %v160
  %v162 = vpop.f32.mrf.mxu0
  %163 = vmatprep.mubr.f32.mxu0 0.0
  %164 = vmatmul.mubr.f32.gmra.mxu0 %v44
  %v165 = vpop.f32.mrf.mxu0
  %v166 = vadd.f32 %v37, %v165
  %v167 = vpop.f32.mrf.mxu0
  %168 = vdwg.mxu0
  %169 = vst [vmem:[%s3] sm:$0xff] %v161
  %170 = vst [vmem:[%s3 + $0x8] sm:$0xff] %v166
  // Predicated region
  $region14: #{generator_forward.29} parent=0 // pred_check
    _
  $region15: #{generator_forward.29} parent=0 // pred_check_branch
    %172 = sbr.rel (0) target = $region17
  $region16: #{generator_forward.29} parent=0 // pred_region
    _
  $region17: #{generator_forward.29} parent=0 // pred_fallthru
    _
  // Predicated region
  $region18: #{generator_forward.29} parent=0 // pred_check
    _
  $region19: #{generator_forward.29} parent=0 // pred_check_branch
    %174 = sbr.rel (0) target = $region21
  $region20: #{generator_forward.29} parent=0 // pred_region
    _
  $region21: #{generator_forward.29} parent=0 // pred_fallthru
    _

</llo_original>
